<compile_context>
chip_gen: v7x
topology: tpu7x:2x2x1
jax: 0.10.0
libtpu: 0.0.40
codegen_flags: <defaults>
</compile_context>

<pallas_src>
import functools
import math

import jax
import jax.numpy as jnp
from jax import lax
from jax.experimental import pallas as pl
from jax.experimental.pallas import tpu as pltpu

_BN_EPS = 1e-5


# ------------------------------ fused kernel ------------------------------

def _fused_kernel(x_ref, w1_ref, b1_ref, wd_ref, b2_ref, w3t_ref, b3_ref,
                  *rest, img_h, img_w, stride, th, wo, use_res):
    """One (batch, row-tile) step of the whole InvertedResidual block.

    x_ref  : (th_in, Wp, Cin)   zero-padded input window incl. 1-row halo
    w1_ref : (Cin, Cmid)        1x1 expand weights (BN folded)
    b1_ref : (1, Cmid)
    wd_ref : (3, 3, Cmid)       depthwise weights (BN folded)
    b2_ref : (1, Cmid)
    w3t_ref: (Cout, Cmid)       1x1 project weights, pre-transposed (BN folded)
    b3_ref : (Cout, 1)
    rest   : [res_ref (Cout, th*wo)] if use_res, then o_ref (Cout, th*wo)
    """
    if use_res:
        res_ref, o_ref = rest
    else:
        (o_ref,) = rest

    th_in, wp, cin = x_ref.shape
    cmid = w1_ref.shape[1]

    # ---- stage 1: 1x1 expand + folded BN + ReLU6 (kept in VMEM/vregs) ----
    x3 = x_ref[...]
    if cin <= 8:
        # K is tiny: VPU broadcast-MAC instead of a K-starved MXU matmul.
        w1 = w1_ref[...]
        h1 = jnp.zeros((th_in, wp, cmid), jnp.float32) + b1_ref[...]
        for k in range(cin):
            h1 = h1 + x3[:, :, k:k + 1] * w1[k:k + 1, :]
    else:
        h1 = jnp.dot(x3.reshape(th_in * wp, cin), w1_ref[...],
                     preferred_element_type=jnp.float32) + b1_ref[...]
        h1 = h1.reshape(th_in, wp, cmid)
    h1 = jnp.clip(h1, 0.0, 6.0)

    # Zero the halo: the depthwise conv's zero padding applies to the
    # *expanded* activation, so positions coming from padded rows/cols -> 0.
    row0 = pl.program_id(1) * (th * stride)
    row_idx = row0 + lax.broadcasted_iota(jnp.int32, (th_in, wp, 1), 0)
    col_idx = lax.broadcasted_iota(jnp.int32, (th_in, wp, 1), 1)
    valid = ((row_idx >= 1) & (row_idx <= img_h) &
             (col_idx >= 1) & (col_idx <= img_w))
    h1 = jnp.where(valid, h1, 0.0)

    # ---- stage 2: 3x3 depthwise conv, stride s, + folded BN + ReLU6 ----
    wd = wd_ref[...]
    acc = jnp.zeros((th, wo, cmid), jnp.float32)
    for kw in range(3):
        # hoist the W-direction (sublane-axis) subsample: 3 slices, not 9
        cols = h1[:, kw:kw + (wo - 1) * stride + 1:stride, :]
        for kh in range(3):
            rows = cols[kh:kh + (th - 1) * stride + 1:stride, :, :]
            acc = acc + rows * wd[kh, kw, :]
    dw = jnp.clip(acc + b2_ref[...], 0.0, 6.0)

    # ---- stage 3: 1x1 project + folded BN (+ residual), channel-major ----
    # Transposed-RHS matmul yields (Cout, th*wo) directly -> lane-dense store.
    dw2d = dw.reshape(th * wo, cmid)
    yt = lax.dot_general(w3t_ref[...], dw2d,
                         dimension_numbers=(((1,), (1,)), ((), ())),
                         preferred_element_type=jnp.float32)
    yt = yt + b3_ref[...]
    if use_res:
        yt = yt + res_ref[...].astype(jnp.float32)
    o_ref[...] = yt.astype(o_ref.dtype)


# ------------------------------ tiling helper ------------------------------

def _choose_row_tile(ho, wo):
    """Output rows per grid tile: (th*wo) a multiple of 128 lanes, th | ho,
    aiming for ~4 row tiles per image for pipelining / megacore sharding."""
    cands = [t for t in range(1, ho + 1) if ho % t == 0 and (t * wo) % 128 == 0]
    if not cands:
        return ho                      # single tile; block == full flat dim
    target = max(1, ho // 4)
    return min(cands, key=lambda t: abs(t - target))


# ------------------------------- forward pass ------------------------------

def inverted_residual_forward(x_nchw, p, stride):
    n, cin, h, w = x_nchw.shape
    cmid = p["w1f"].shape[1]
    cout = p["w3tf"].shape[0]
    ho = (h - 1) // stride + 1
    wo = (w - 1) // stride + 1
    use_res = (stride == 1) and (cin == cout)

    th = _choose_row_tile(ho, wo)          # output rows per grid tile
    nt = ho // th
    th_in = (th - 1) * stride + 3          # input rows (incl. halo) per tile
    wp = w + 2

    # Glue on the SMALL original input only: NCHW->NHWC, zero-pad H/W by 1 and
    # extract overlapping row windows (1-row halo), so every grid step gets a
    # self-contained non-overlapping BlockSpec tile.
    x_nhwc = jnp.transpose(x_nchw, (0, 2, 3, 1))
    xpad = jnp.pad(x_nhwc, ((0, 0), (1, 1), (1, 1), (0, 0)))
    x_tiles = jnp.stack(
        [xpad[:, t * th * stride: t * th * stride + th_in] for t in range(nt)],
        axis=1).reshape(n * nt, th_in, wp, cin)

    kernel = functools.partial(_fused_kernel, img_h=h, img_w=w, stride=stride,
                               th=th, wo=wo, use_res=use_res)

    in_specs = [
        pl.BlockSpec((None, th_in, wp, cin),
                     lambda i, t, nt=nt: (i * nt + t, 0, 0, 0)),
        pl.BlockSpec((cin, cmid), lambda i, t: (0, 0)),        # resident weights
        pl.BlockSpec((1, cmid), lambda i, t: (0, 0)),
        pl.BlockSpec((3, 3, cmid), lambda i, t: (0, 0, 0)),
        pl.BlockSpec((1, cmid), lambda i, t: (0, 0)),
        pl.BlockSpec((cout, cmid), lambda i, t: (0, 0)),
        pl.BlockSpec((cout, 1), lambda i, t: (0, 0)),
    ]
    inputs = [x_tiles, p["w1f"], p["b1"].reshape(1, cmid), p["wdf"],
              p["b2"].reshape(1, cmid), p["w3tf"], p["b3"].reshape(cout, 1)]
    if use_res:
        in_specs.append(pl.BlockSpec((None, cout, th * wo),
                                     lambda i, t: (i, 0, t)))
        inputs.append(x_nchw.reshape(n, cin, h * w))

    out = pl.pallas_call(
        kernel,
        out_shape=jax.ShapeDtypeStruct((n, cout, ho * wo), jnp.float32),
        grid=(n, nt),
        in_specs=in_specs,
        out_specs=pl.BlockSpec((None, cout, th * wo), lambda i, t: (i, 0, t)),
        compiler_params=pltpu.CompilerParams(
            dimension_semantics=("parallel", "parallel")),
    )(*inputs)

    return out.reshape(n, cout, ho, wo)    # already NCHW channel-major


# ----------------------------- parameter setup -----------------------------

def _bn_fold(gamma, beta, mean, var):
    scale = gamma / jnp.sqrt(var + _BN_EPS)
    bias = beta - mean * scale
    return scale, bias


def make_params(cin, cout, expand_ratio, key):
    cmid = cin * expand_ratio
    ks = jax.random.split(key, 15)

    def bn(k0, k1, k2, k3, c):
        gamma = jax.random.uniform(k0, (c,), jnp.float32, 0.5, 1.5)
        beta = jax.random.normal(k1, (c,), jnp.float32) * 0.1
        mean = jax.random.normal(k2, (c,), jnp.float32) * 0.1
        var = jax.random.uniform(k3, (c,), jnp.float32, 0.5, 1.5)
        return gamma, beta, mean, var

    w1 = jax.random.normal(ks[0], (cin, cmid), jnp.float32) / math.sqrt(cin)
    wd = jax.random.normal(ks[1], (3, 3, cmid), jnp.float32) / 3.0
    w3 = jax.random.normal(ks[2], (cmid, cout), jnp.float32) / math.sqrt(cmid)

    s1, b1 = _bn_fold(*bn(ks[3], ks[4], ks[5], ks[6], cmid))
    s2, b2 = _bn_fold(*bn(ks[7], ks[8], ks[9], ks[10], cmid))
    s3, b3 = _bn_fold(*bn(ks[11], ks[12], ks[13], ks[14], cout))

    return {
        "w1f": w1 * s1[None, :], "b1": b1,
        "wdf": wd * s2[None, None, :], "b2": b2,
        "w3tf": (w3 * s3[None, :]).T, "b3": b3,     # (cout, cmid) pre-transposed
    }


# --------------------- pure-JAX reference (for checking) ---------------------

def reference_forward(x_nchw, p, stride):
    x = jnp.transpose(x_nchw, (0, 2, 3, 1))
    dn = ("NHWC", "HWIO", "NHWC")
    h1 = lax.conv_general_dilated(
        x, p["w1f"][None, None], (1, 1), "VALID", dimension_numbers=dn) + p["b1"]
    h1 = jnp.clip(h1, 0.0, 6.0)
    cmid = p["wdf"].shape[-1]
    wd = p["wdf"].reshape(3, 3, 1, cmid)
    h2 = lax.conv_general_dilated(
        h1, wd, (stride, stride), ((1, 1), (1, 1)),
        dimension_numbers=dn, feature_group_count=cmid) + p["b2"]
    h2 = jnp.clip(h2, 0.0, 6.0)
    h3 = lax.conv_general_dilated(
        h2, p["w3tf"].T[None, None], (1, 1), "VALID",
        dimension_numbers=dn) + p["b3"]
    if stride == 1 and x.shape[-1] == h3.shape[-1]:
        h3 = h3 + x
    return jnp.transpose(h3, (0, 3, 1, 2))


# ------------------------------------ main ------------------------------------

if __name__ == "__main__":
    # InvertedResidual(x=4, output=4, stride=1, expand_ratio=6) -> residual active
    cin, cout, stride, expand_ratio = 4, 4, 1, 6
    n, h, w = 2, 16, 16

    key = jax.random.PRNGKey(0)
    kx, kp = jax.random.split(key)
    x = jax.random.normal(kx, (n, cin, h, w), jnp.float32)   # NCHW, like PyTorch
    params = make_params(cin, cout, expand_ratio, kp)

    out = jax.block_until_ready(inverted_residual_forward(x, params, stride))
    ref = jax.block_until_ready(reference_forward(x, params, stride))

    assert out.shape == (n, cout, h // stride, w // stride), out.shape
    max_err = float(jnp.max(jnp.abs(out - ref)))
    assert jnp.allclose(out, ref, atol=1e-3, rtol=1e-3), max_err

    print("KERNEL_OK")
</pallas_src>

<mosaic_0001>
module attributes {stable_mosaic.version = 11 : i64} {
  func.func @_fused_kernel(%arg0: i32, %arg1: i32, %arg2: memref<1x10x18x4xf32, #tpu.memory_space<vmem>>, %arg3: memref<4x24xf32, #tpu.memory_space<vmem>>, %arg4: memref<1x24xf32, #tpu.memory_space<vmem>>, %arg5: memref<3x3x24xf32, #tpu.memory_space<vmem>>, %arg6: memref<1x24xf32, #tpu.memory_space<vmem>>, %arg7: memref<4x24xf32, #tpu.memory_space<vmem>>, %arg8: memref<4x1xf32, #tpu.memory_space<vmem>>, %arg9: memref<1x4x128xf32, #tpu.memory_space<vmem>>, %arg10: memref<1x4x128xf32, #tpu.memory_space<vmem>>) attributes {dimension_semantics = [#tpu.dimension_semantics<parallel>, #tpu.dimension_semantics<parallel>], iteration_bounds = array<i64: 2, 2>, scalar_prefetch = 0 : i64, scratch_operands = 0 : i64, tpu.core_type = #tpu.core_type<tc>, window_params = [{transform_indices = @transform_0, window_bounds = array<i64: 1, 10, 18, 4>}, {pipeline_mode = #tpu.pipeline_mode<synchronous>, transform_indices = @transform_1, window_bounds = array<i64: 4, 24>}, {pipeline_mode = #tpu.pipeline_mode<synchronous>, transform_indices = @transform_2, window_bounds = array<i64: 1, 24>}, {pipeline_mode = #tpu.pipeline_mode<synchronous>, transform_indices = @transform_3, window_bounds = array<i64: 3, 3, 24>}, {pipeline_mode = #tpu.pipeline_mode<synchronous>, transform_indices = @transform_4, window_bounds = array<i64: 1, 24>}, {pipeline_mode = #tpu.pipeline_mode<synchronous>, transform_indices = @transform_5, window_bounds = array<i64: 4, 24>}, {pipeline_mode = #tpu.pipeline_mode<synchronous>, transform_indices = @transform_6, window_bounds = array<i64: 4, 1>}, {transform_indices = @transform_7, window_bounds = array<i64: 1, 4, 128>}, {transform_indices = @transform_8, window_bounds = array<i64: 1, 4, 128>}]} {
    %c0 = arith.constant 0 : index
    %c0_0 = arith.constant 0 : index
    %c0_1 = arith.constant 0 : index
    %c0_2 = arith.constant 0 : index
    %0 = vector.load %arg2[%c0, %c0_0, %c0_1, %c0_2] : memref<1x10x18x4xf32, #tpu.memory_space<vmem>>, vector<1x10x18x4xf32>
    %1 = vector.shape_cast %0 : vector<1x10x18x4xf32> to vector<10x18x4xf32>
    %c0_3 = arith.constant 0 : index
    %c0_4 = arith.constant 0 : index
    %2 = vector.load %arg3[%c0_3, %c0_4] : memref<4x24xf32, #tpu.memory_space<vmem>>, vector<4x24xf32>
    %cst = arith.constant 0.000000e+00 : f32
    %3 = vector.broadcast %cst : f32 to vector<10x18x24xf32>
    %c0_5 = arith.constant 0 : index
    %c0_6 = arith.constant 0 : index
    %4 = vector.load %arg4[%c0_5, %c0_6] : memref<1x24xf32, #tpu.memory_space<vmem>>, vector<1x24xf32>
    %5 = vector.shape_cast %4 : vector<1x24xf32> to vector<1x1x24xf32>
    %6 = vector.broadcast %5 : vector<1x1x24xf32> to vector<10x18x24xf32>
    %7 = arith.addf %3, %6 : vector<10x18x24xf32>
    %8 = vector.extract_strided_slice %1 {offsets = [0, 0, 0], sizes = [10, 18, 1], strides = [1, 1, 1]} : vector<10x18x4xf32> to vector<10x18x1xf32>
    %9 = vector.extract_strided_slice %2 {offsets = [0, 0], sizes = [1, 24], strides = [1, 1]} : vector<4x24xf32> to vector<1x24xf32>
    %10 = vector.shape_cast %9 : vector<1x24xf32> to vector<1x1x24xf32>
    %11 = vector.broadcast %8 : vector<10x18x1xf32> to vector<10x18x24xf32>
    %12 = vector.broadcast %10 : vector<1x1x24xf32> to vector<10x18x24xf32>
    %13 = arith.mulf %11, %12 : vector<10x18x24xf32>
    %14 = arith.addf %7, %13 : vector<10x18x24xf32>
    %15 = vector.extract_strided_slice %1 {offsets = [0, 0, 1], sizes = [10, 18, 1], strides = [1, 1, 1]} : vector<10x18x4xf32> to vector<10x18x1xf32>
    %16 = vector.extract_strided_slice %2 {offsets = [1, 0], sizes = [1, 24], strides = [1, 1]} : vector<4x24xf32> to vector<1x24xf32>
    %17 = vector.shape_cast %16 : vector<1x24xf32> to vector<1x1x24xf32>
    %18 = vector.broadcast %15 : vector<10x18x1xf32> to vector<10x18x24xf32>
    %19 = vector.broadcast %17 : vector<1x1x24xf32> to vector<10x18x24xf32>
    %20 = arith.mulf %18, %19 : vector<10x18x24xf32>
    %21 = arith.addf %14, %20 : vector<10x18x24xf32>
    %22 = vector.extract_strided_slice %1 {offsets = [0, 0, 2], sizes = [10, 18, 1], strides = [1, 1, 1]} : vector<10x18x4xf32> to vector<10x18x1xf32>
    %23 = vector.extract_strided_slice %2 {offsets = [2, 0], sizes = [1, 24], strides = [1, 1]} : vector<4x24xf32> to vector<1x24xf32>
    %24 = vector.shape_cast %23 : vector<1x24xf32> to vector<1x1x24xf32>
    %25 = vector.broadcast %22 : vector<10x18x1xf32> to vector<10x18x24xf32>
    %26 = vector.broadcast %24 : vector<1x1x24xf32> to vector<10x18x24xf32>
    %27 = arith.mulf %25, %26 : vector<10x18x24xf32>
    %28 = arith.addf %21, %27 : vector<10x18x24xf32>
    %29 = vector.extract_strided_slice %1 {offsets = [0, 0, 3], sizes = [10, 18, 1], strides = [1, 1, 1]} : vector<10x18x4xf32> to vector<10x18x1xf32>
    %30 = vector.extract_strided_slice %2 {offsets = [3, 0], sizes = [1, 24], strides = [1, 1]} : vector<4x24xf32> to vector<1x24xf32>
    %31 = vector.shape_cast %30 : vector<1x24xf32> to vector<1x1x24xf32>
    %32 = vector.broadcast %29 : vector<10x18x1xf32> to vector<10x18x24xf32>
    %33 = vector.broadcast %31 : vector<1x1x24xf32> to vector<10x18x24xf32>
    %34 = arith.mulf %32, %33 : vector<10x18x24xf32>
    %35 = arith.addf %28, %34 : vector<10x18x24xf32>
    %cst_7 = arith.constant 0.000000e+00 : f32
    %cst_8 = arith.constant 6.000000e+00 : f32
    %36 = vector.broadcast %cst_7 : f32 to vector<10x18x24xf32>
    %37 = arith.maximumf %36, %35 : vector<10x18x24xf32>
    %38 = vector.broadcast %cst_8 : f32 to vector<10x18x24xf32>
    %39 = arith.minimumf %38, %37 : vector<10x18x24xf32>
    %c8_i32 = arith.constant 8 : i32
    %40 = arith.muli %arg1, %c8_i32 : i32
    %41 = tpu.iota {dimensions = array<i32: 0>} : vector<10x18x1xi32>
    %42 = vector.broadcast %40 : i32 to vector<10x18x1xi32>
    %43 = arith.addi %42, %41 : vector<10x18x1xi32>
    %44 = tpu.iota {dimensions = array<i32: 1>} : vector<10x18x1xi32>
    %c1_i32 = arith.constant 1 : i32
    %45 = vector.broadcast %c1_i32 : i32 to vector<10x18x1xi32>
    %46 = arith.cmpi sge, %43, %45 : vector<10x18x1xi32>
    %c16_i32 = arith.constant 16 : i32
    %47 = vector.broadcast %c16_i32 : i32 to vector<10x18x1xi32>
    %48 = arith.cmpi sle, %43, %47 : vector<10x18x1xi32>
    %49 = arith.andi %46, %48 : vector<10x18x1xi1>
    %c1_i32_9 = arith.constant 1 : i32
    %50 = vector.broadcast %c1_i32_9 : i32 to vector<10x18x1xi32>
    %51 = arith.cmpi sge, %44, %50 : vector<10x18x1xi32>
    %52 = arith.andi %49, %51 : vector<10x18x1xi1>
    %c16_i32_10 = arith.constant 16 : i32
    %53 = vector.broadcast %c16_i32_10 : i32 to vector<10x18x1xi32>
    %54 = arith.cmpi sle, %44, %53 : vector<10x18x1xi32>
    %55 = arith.andi %52, %54 : vector<10x18x1xi1>
    %cst_11 = arith.constant 0.000000e+00 : f32
    %56 = vector.shape_cast %55 : vector<10x18x1xi1> to vector<10x18x1xi1>
    %57 = vector.broadcast %56 : vector<10x18x1xi1> to vector<10x18x24xi1>
    %58 = vector.broadcast %cst_11 : f32 to vector<10x18x24xf32>
    %59 = arith.select %57, %39, %58 : vector<10x18x24xi1>, vector<10x18x24xf32>
    %c0_12 = arith.constant 0 : index
    %c0_13 = arith.constant 0 : index
    %c0_14 = arith.constant 0 : index
    %60 = vector.load %arg5[%c0_12, %c0_13, %c0_14] : memref<3x3x24xf32, #tpu.memory_space<vmem>>, vector<3x3x24xf32>
    %cst_15 = arith.constant 0.000000e+00 : f32
    %61 = vector.broadcast %cst_15 : f32 to vector<8x16x24xf32>
    %62 = vector.extract_strided_slice %59 {offsets = [0, 0, 0], sizes = [10, 16, 24], strides = [1, 1, 1]} : vector<10x18x24xf32> to vector<10x16x24xf32>
    %63 = vector.extract_strided_slice %62 {offsets = [0, 0, 0], sizes = [8, 16, 24], strides = [1, 1, 1]} : vector<10x16x24xf32> to vector<8x16x24xf32>
    %64 = vector.extract_strided_slice %60 {offsets = [0, 0, 0], sizes = [1, 1, 24], strides = [1, 1, 1]} : vector<3x3x24xf32> to vector<1x1x24xf32>
    %65 = vector.shape_cast %64 : vector<1x1x24xf32> to vector<24xf32>
    %66 = vector.shape_cast %65 : vector<24xf32> to vector<1x1x24xf32>
    %67 = vector.broadcast %66 : vector<1x1x24xf32> to vector<8x16x24xf32>
    %68 = arith.mulf %63, %67 : vector<8x16x24xf32>
    %69 = arith.addf %61, %68 : vector<8x16x24xf32>
    %70 = vector.extract_strided_slice %62 {offsets = [1, 0, 0], sizes = [8, 16, 24], strides = [1, 1, 1]} : vector<10x16x24xf32> to vector<8x16x24xf32>
    %71 = vector.extract_strided_slice %60 {offsets = [1, 0, 0], sizes = [1, 1, 24], strides = [1, 1, 1]} : vector<3x3x24xf32> to vector<1x1x24xf32>
    %72 = vector.shape_cast %71 : vector<1x1x24xf32> to vector<24xf32>
    %73 = vector.shape_cast %72 : vector<24xf32> to vector<1x1x24xf32>
    %74 = vector.broadcast %73 : vector<1x1x24xf32> to vector<8x16x24xf32>
    %75 = arith.mulf %70, %74 : vector<8x16x24xf32>
    %76 = arith.addf %69, %75 : vector<8x16x24xf32>
    %77 = vector.extract_strided_slice %62 {offsets = [2, 0, 0], sizes = [8, 16, 24], strides = [1, 1, 1]} : vector<10x16x24xf32> to vector<8x16x24xf32>
    %78 = vector.extract_strided_slice %60 {offsets = [2, 0, 0], sizes = [1, 1, 24], strides = [1, 1, 1]} : vector<3x3x24xf32> to vector<1x1x24xf32>
    %79 = vector.shape_cast %78 : vector<1x1x24xf32> to vector<24xf32>
    %80 = vector.shape_cast %79 : vector<24xf32> to vector<1x1x24xf32>
    %81 = vector.broadcast %80 : vector<1x1x24xf32> to vector<8x16x24xf32>
    %82 = arith.mulf %77, %81 : vector<8x16x24xf32>
    %83 = arith.addf %76, %82 : vector<8x16x24xf32>
    %84 = vector.extract_strided_slice %59 {offsets = [0, 1, 0], sizes = [10, 16, 24], strides = [1, 1, 1]} : vector<10x18x24xf32> to vector<10x16x24xf32>
    %85 = vector.extract_strided_slice %84 {offsets = [0, 0, 0], sizes = [8, 16, 24], strides = [1, 1, 1]} : vector<10x16x24xf32> to vector<8x16x24xf32>
    %86 = vector.extract_strided_slice %60 {offsets = [0, 1, 0], sizes = [1, 1, 24], strides = [1, 1, 1]} : vector<3x3x24xf32> to vector<1x1x24xf32>
    %87 = vector.shape_cast %86 : vector<1x1x24xf32> to vector<24xf32>
    %88 = vector.shape_cast %87 : vector<24xf32> to vector<1x1x24xf32>
    %89 = vector.broadcast %88 : vector<1x1x24xf32> to vector<8x16x24xf32>
    %90 = arith.mulf %85, %89 : vector<8x16x24xf32>
    %91 = arith.addf %83, %90 : vector<8x16x24xf32>
    %92 = vector.extract_strided_slice %84 {offsets = [1, 0, 0], sizes = [8, 16, 24], strides = [1, 1, 1]} : vector<10x16x24xf32> to vector<8x16x24xf32>
    %93 = vector.extract_strided_slice %60 {offsets = [1, 1, 0], sizes = [1, 1, 24], strides = [1, 1, 1]} : vector<3x3x24xf32> to vector<1x1x24xf32>
    %94 = vector.shape_cast %93 : vector<1x1x24xf32> to vector<24xf32>
    %95 = vector.shape_cast %94 : vector<24xf32> to vector<1x1x24xf32>
    %96 = vector.broadcast %95 : vector<1x1x24xf32> to vector<8x16x24xf32>
    %97 = arith.mulf %92, %96 : vector<8x16x24xf32>
    %98 = arith.addf %91, %97 : vector<8x16x24xf32>
    %99 = vector.extract_strided_slice %84 {offsets = [2, 0, 0], sizes = [8, 16, 24], strides = [1, 1, 1]} : vector<10x16x24xf32> to vector<8x16x24xf32>
    %100 = vector.extract_strided_slice %60 {offsets = [2, 1, 0], sizes = [1, 1, 24], strides = [1, 1, 1]} : vector<3x3x24xf32> to vector<1x1x24xf32>
    %101 = vector.shape_cast %100 : vector<1x1x24xf32> to vector<24xf32>
    %102 = vector.shape_cast %101 : vector<24xf32> to vector<1x1x24xf32>
    %103 = vector.broadcast %102 : vector<1x1x24xf32> to vector<8x16x24xf32>
    %104 = arith.mulf %99, %103 : vector<8x16x24xf32>
    %105 = arith.addf %98, %104 : vector<8x16x24xf32>
    %106 = vector.extract_strided_slice %59 {offsets = [0, 2, 0], sizes = [10, 16, 24], strides = [1, 1, 1]} : vector<10x18x24xf32> to vector<10x16x24xf32>
    %107 = vector.extract_strided_slice %106 {offsets = [0, 0, 0], sizes = [8, 16, 24], strides = [1, 1, 1]} : vector<10x16x24xf32> to vector<8x16x24xf32>
    %108 = vector.extract_strided_slice %60 {offsets = [0, 2, 0], sizes = [1, 1, 24], strides = [1, 1, 1]} : vector<3x3x24xf32> to vector<1x1x24xf32>
    %109 = vector.shape_cast %108 : vector<1x1x24xf32> to vector<24xf32>
    %110 = vector.shape_cast %109 : vector<24xf32> to vector<1x1x24xf32>
    %111 = vector.broadcast %110 : vector<1x1x24xf32> to vector<8x16x24xf32>
    %112 = arith.mulf %107, %111 : vector<8x16x24xf32>
    %113 = arith.addf %105, %112 : vector<8x16x24xf32>
    %114 = vector.extract_strided_slice %106 {offsets = [1, 0, 0], sizes = [8, 16, 24], strides = [1, 1, 1]} : vector<10x16x24xf32> to vector<8x16x24xf32>
    %115 = vector.extract_strided_slice %60 {offsets = [1, 2, 0], sizes = [1, 1, 24], strides = [1, 1, 1]} : vector<3x3x24xf32> to vector<1x1x24xf32>
    %116 = vector.shape_cast %115 : vector<1x1x24xf32> to vector<24xf32>
    %117 = vector.shape_cast %116 : vector<24xf32> to vector<1x1x24xf32>
    %118 = vector.broadcast %117 : vector<1x1x24xf32> to vector<8x16x24xf32>
    %119 = arith.mulf %114, %118 : vector<8x16x24xf32>
    %120 = arith.addf %113, %119 : vector<8x16x24xf32>
    %121 = vector.extract_strided_slice %106 {offsets = [2, 0, 0], sizes = [8, 16, 24], strides = [1, 1, 1]} : vector<10x16x24xf32> to vector<8x16x24xf32>
    %122 = vector.extract_strided_slice %60 {offsets = [2, 2, 0], sizes = [1, 1, 24], strides = [1, 1, 1]} : vector<3x3x24xf32> to vector<1x1x24xf32>
    %123 = vector.shape_cast %122 : vector<1x1x24xf32> to vector<24xf32>
    %124 = vector.shape_cast %123 : vector<24xf32> to vector<1x1x24xf32>
    %125 = vector.broadcast %124 : vector<1x1x24xf32> to vector<8x16x24xf32>
    %126 = arith.mulf %121, %125 : vector<8x16x24xf32>
    %127 = arith.addf %120, %126 : vector<8x16x24xf32>
    %c0_16 = arith.constant 0 : index
    %c0_17 = arith.constant 0 : index
    %128 = vector.load %arg6[%c0_16, %c0_17] : memref<1x24xf32, #tpu.memory_space<vmem>>, vector<1x24xf32>
    %129 = vector.shape_cast %128 : vector<1x24xf32> to vector<1x1x24xf32>
    %130 = vector.broadcast %129 : vector<1x1x24xf32> to vector<8x16x24xf32>
    %131 = arith.addf %127, %130 : vector<8x16x24xf32>
    %cst_18 = arith.constant 0.000000e+00 : f32
    %cst_19 = arith.constant 6.000000e+00 : f32
    %132 = vector.broadcast %cst_18 : f32 to vector<8x16x24xf32>
    %133 = arith.maximumf %132, %131 : vector<8x16x24xf32>
    %134 = vector.broadcast %cst_19 : f32 to vector<8x16x24xf32>
    %135 = arith.minimumf %134, %133 : vector<8x16x24xf32>
    %136 = vector.shape_cast %135 : vector<8x16x24xf32> to vector<128x24xf32>
    %c0_20 = arith.constant 0 : index
    %c0_21 = arith.constant 0 : index
    %137 = vector.load %arg7[%c0_20, %c0_21] : memref<4x24xf32, #tpu.memory_space<vmem>>, vector<4x24xf32>
    %cst_22 = arith.constant dense<0.000000e+00> : vector<4x128xf32>
    %138 = tpu.matmul %137, %136, %cst_22 {dimension_numbers = #tpu.dot_dimension_numbers<[1], [1], [0], [0], [0, 0, 1, 0], [], []>} : vector<4x24xf32>, vector<128x24xf32>, vector<4x128xf32> -> vector<4x128xf32>
    %c0_23 = arith.constant 0 : index
    %c0_24 = arith.constant 0 : index
    %139 = vector.load %arg8[%c0_23, %c0_24] : memref<4x1xf32, #tpu.memory_space<vmem>>, vector<4x1xf32>
    %140 = vector.broadcast %139 : vector<4x1xf32> to vector<4x128xf32>
    %141 = arith.addf %138, %140 : vector<4x128xf32>
    %c0_25 = arith.constant 0 : index
    %c0_26 = arith.constant 0 : index
    %c0_27 = arith.constant 0 : index
    %142 = vector.load %arg9[%c0_25, %c0_26, %c0_27] : memref<1x4x128xf32, #tpu.memory_space<vmem>>, vector<1x4x128xf32>
    %143 = vector.shape_cast %142 : vector<1x4x128xf32> to vector<4x128xf32>
    %144 = arith.addf %141, %143 : vector<4x128xf32>
    %c0_28 = arith.constant 0 : index
    %c0_29 = arith.constant 0 : index
    %c0_30 = arith.constant 0 : index
    %145 = vector.load %arg10[%c0_28, %c0_29, %c0_30] : memref<1x4x128xf32, #tpu.memory_space<vmem>>, vector<1x4x128xf32>
    %146 = vector.shape_cast %145 : vector<1x4x128xf32> to vector<4x128xf32>
    %147 = vector.shape_cast %144 : vector<4x128xf32> to vector<1x4x128xf32>
    tpu.vector_store %arg10[%c0_28, %c0_29, %c0_30], %147 {strides = array<i32>} : memref<1x4x128xf32, #tpu.memory_space<vmem>>, vector<1x4x128xf32>,
    return
  }
  func.func @transform_0(%arg0: i32, %arg1: i32) -> (i32, i32, i32, i32) {
    %c2_i32 = arith.constant 2 : i32
    %0 = arith.muli %arg0, %c2_i32 : i32
    %1 = arith.addi %0, %arg1 : i32
    %c0_i32 = arith.constant 0 : i32
    %c0_i32_0 = arith.constant 0 : i32
    %c0_i32_1 = arith.constant 0 : i32
    %c0_i32_2 = arith.constant 0 : i32
    return %1, %c0_i32, %c0_i32_0, %c0_i32_1 : i32, i32, i32, i32
  }
  func.func @transform_1(%arg0: i32, %arg1: i32) -> (i32, i32) {
    %c0_i32 = arith.constant 0 : i32
    %c0_i32_0 = arith.constant 0 : i32
    %c0_i32_1 = arith.constant 0 : i32
    return %c0_i32, %c0_i32_0 : i32, i32
  }
  func.func @transform_2(%arg0: i32, %arg1: i32) -> (i32, i32) {
    %c0_i32 = arith.constant 0 : i32
    %c0_i32_0 = arith.constant 0 : i32
    %c0_i32_1 = arith.constant 0 : i32
    return %c0_i32, %c0_i32_0 : i32, i32
  }
  func.func @transform_3(%arg0: i32, %arg1: i32) -> (i32, i32, i32) {
    %c0_i32 = arith.constant 0 : i32
    %c0_i32_0 = arith.constant 0 : i32
    %c0_i32_1 = arith.constant 0 : i32
    %c0_i32_2 = arith.constant 0 : i32
    return %c0_i32, %c0_i32_0, %c0_i32_1 : i32, i32, i32
  }
  func.func @transform_4(%arg0: i32, %arg1: i32) -> (i32, i32) {
    %c0_i32 = arith.constant 0 : i32
    %c0_i32_0 = arith.constant 0 : i32
    %c0_i32_1 = arith.constant 0 : i32
    return %c0_i32, %c0_i32_0 : i32, i32
  }
  func.func @transform_5(%arg0: i32, %arg1: i32) -> (i32, i32) {
    %c0_i32 = arith.constant 0 : i32
    %c0_i32_0 = arith.constant 0 : i32
    %c0_i32_1 = arith.constant 0 : i32
    return %c0_i32, %c0_i32_0 : i32, i32
  }
  func.func @transform_6(%arg0: i32, %arg1: i32) -> (i32, i32) {
    %c0_i32 = arith.constant 0 : i32
    %c0_i32_0 = arith.constant 0 : i32
    %c0_i32_1 = arith.constant 0 : i32
    return %c0_i32, %c0_i32_0 : i32, i32
  }
  func.func @transform_7(%arg0: i32, %arg1: i32) -> (i32, i32, i32) {
    %c0_i32 = arith.constant 0 : i32
    %c0_i32_0 = arith.constant 0 : i32
    return %arg0, %c0_i32, %arg1 : i32, i32, i32
  }
  func.func @transform_8(%arg0: i32, %arg1: i32) -> (i32, i32, i32) {
    %c0_i32 = arith.constant 0 : i32
    %c0_i32_0 = arith.constant 0 : i32
    return %arg0, %c0_i32, %arg1 : i32, i32, i32
  }
}

</mosaic_0001>

<llo_original>
// kernel: tpu_custom_call.1
$region0: #{tpu_custom_call.1}
  #allocation0 [shape = 'u32[]', space=smem, size = 0x4, offset = 0x4, fixed_abs, tag = 'smem constant byte address 0x4 - core index']
  #allocation1 [shape = 'u32[144,128]{1,0:T(1,128)}', space=vmem, size = 0x12000, scoped, tag = 'internal scratch']
  %s0 = inlined_call_operand.vmem [shape: f32[4,10,18,4], index: 0, kind: input, shape index: {}]
  %s1 = inlined_call_operand.vmem [shape: f32[4,24], index: 1, kind: input, shape index: {}]
  %s2 = inlined_call_operand.vmem [shape: f32[1,24], index: 2, kind: input, shape index: {}]
  %s3 = inlined_call_operand.vmem [shape: f32[3,3,24], index: 3, kind: input, shape index: {}]
  %s4 = inlined_call_operand.vmem [shape: f32[1,24], index: 4, kind: input, shape index: {}]
  %s5 = inlined_call_operand.vmem [shape: f32[4,24], index: 5, kind: input, shape index: {}]
  %s6 = inlined_call_operand.vmem [shape: f32[4,1], index: 6, kind: input, shape index: {}]
  %s7 = inlined_call_operand.vmem [shape: f32[2,4,256], index: 7, kind: input, shape index: {}]
  %s8 = inlined_call_operand.hbm [shape: f32[2,4,256], index: 8, kind: output, shape index: {}]
  %s9 = sld [smem:[#allocation0]]
  $region65: #{tpu_custom_call.1} parent=0
    _
  %s11 = ssub.s32 1, %s9
  %s12 = scalar_select 0, %s11, %s9
  $region1: #{tpu_custom_call.1} parent=0
    #allocation2 [shape = 'u8[4096]{0}', space=vmem, size = 0x1000, scoped, tag = 'output window, operand 0']
    #allocation3 [shape = 's32[2]{0}', space=sflag, size = 0x8, scoped, tag = 'scoped memory for tpu_custom_call.1']
    %13 = vsyncpa [#allocation3], 0
    %s14 = scalar_lea.sflag [#allocation3], 1
    %15 = vsyncpa %s14, 0
    loop: start=0, step=1, limit=6
    $region2: #{tpu_custom_call.1} parent=1 // loop_pre_header
      _
    $region3: #{tpu_custom_call.1} parent=1 // loop_header
      %s17 = sphi 0, %s21
      %p18 = scmp.ge.s32.totalorder %s17, 6
      %s24 = sphi 0, %s36
      %s25 = sphi 0, %s32
      %s26 = sphi 0, %s24
      %s27 = sphi 0, %s25
      %s28 = sphi 0, %s26
      %s29 = sphi 0, %s27
      %s43 = sphi 0, %s45
      %s46 = sphi 0, %s43
      %s47 = sphi 0, %s46
      %s63 = sphi 0, %s47
      %s67 = sphi 0, %s67
      %s69 = sphi 0, %s67
      %s70 = sphi 0, %s69
      %s84 = sphi 0, %s70
      %s88 = sphi 0, %s88
      %s90 = sphi 0, %s88
      %s91 = sphi 0, %s90
      %s105 = sphi 0, %s91
      %s109 = sphi 0, %s109
      %s111 = sphi 0, %s109
      %s112 = sphi 0, %s111
      %s126 = sphi 0, %s112
      %s130 = sphi 0, %s130
      %s132 = sphi 0, %s130
      %s133 = sphi 0, %s132
      %s147 = sphi 0, %s133
      %s151 = sphi 0, %s151
      %s153 = sphi 0, %s151
      %s154 = sphi 0, %s153
      %s168 = sphi 0, %s154
      %s172 = sphi 0, %s172
      %s174 = sphi 0, %s172
      %s175 = sphi 0, %s174
      %s189 = sphi 0, %s175
      %s197 = sphi 0, %s199
      %s200 = sphi 0, %s197
      %s201 = sphi 0, %s200
      %s217 = sphi 0, %s201
      %s225 = sphi 0, %s227
      %s228 = sphi 0, %s225
      %s229 = sphi 0, %s228
      %s245 = sphi 0, %s229
    $region4: #{tpu_custom_call.1} parent=1 // loop_header_branch
      %20 = sbr.rel (%p18) target = $region8
    $region5: #{tpu_custom_call.1} parent=1 // loop_body
      %s22 = ssub.s32 %s17, 1
      %s23 = ssub.s32 %s17, 2
      %s30 = sadd.s32 1, %s25
      %p31 = scmp.ge.s32.totalorder %s30, 2
      %s32 = scalar_select %p31, 0, %s30
      %s33 = sadd.s32 1, %s24
      %s34 = scalar_select %p31, %s33, %s24
      %p35 = scmp.ge.s32.totalorder %s34, 2
      %s36 = scalar_select %p35, 0, %s34
      %s37 = smul.u32 %s24, 2
      %s38 = sadd.s32 %s37, %s25
      %s39 = smul.u32 %s36, 2
      %s40 = sadd.s32 %s39, %s32
      %s41 = ssub.s32 %s38, %s40
      %p42 = scmp.eq.s32.totalorder %s41, 0
      %s44 = sadd.s32 %s43, 1
      %s45 = scalar_select %p42, %s43, %s44
      %p48 = pneg %p42
      %p49 = scmp.eq.s32.totalorder %s17, 3
      %p50 = por %p48, %p49
      %p51 = scmp.ne.s32.totalorder %s43, %s46
      %p52 = scmp.eq.s32.totalorder %s17, 0
      %p53 = por %p51, %p52
      %p54 = scmp.ne.s32.totalorder %s43, %s46
      %p55 = scmp.eq.s32.totalorder %s22, 3
      %p56 = por %p54, %p55
      %p57 = scmp.ne.s32.totalorder %s46, %s47
      %p58 = scmp.eq.s32.totalorder %s22, 0
      %p59 = por %p57, %p58
      %p60 = scmp.ne.s32.totalorder %s46, %s47
      %p61 = scmp.eq.s32.totalorder %s23, 3
      %p62 = por %p60, %p61
      %p64 = scmp.ne.s32.totalorder %s47, %s63
      %p65 = scmp.eq.s32.totalorder %s23, 0
      %p66 = por %p64, %p65
      %s68 = sadd.s32 %s67, 1
      %p71 = scmp.eq.s32.totalorder %s17, 3
      %p72 = scmp.ne.s32.totalorder %s67, %s69
      %p73 = scmp.eq.s32.totalorder %s17, 0
      %p74 = por %p72, %p73
      %p75 = scmp.ne.s32.totalorder %s67, %s69
      %p76 = scmp.eq.s32.totalorder %s22, 3
      %p77 = por %p75, %p76
      %p78 = scmp.ne.s32.totalorder %s69, %s70
      %p79 = scmp.eq.s32.totalorder %s22, 0
      %p80 = por %p78, %p79
      %p81 = scmp.ne.s32.totalorder %s69, %s70
      %p82 = scmp.eq.s32.totalorder %s23, 3
      %p83 = por %p81, %p82
      %p85 = scmp.ne.s32.totalorder %s70, %s84
      %p86 = scmp.eq.s32.totalorder %s23, 0
      %p87 = por %p85, %p86
      %s89 = sadd.s32 %s88, 1
      %p92 = scmp.eq.s32.totalorder %s17, 3
      %p93 = scmp.ne.s32.totalorder %s88, %s90
      %p94 = scmp.eq.s32.totalorder %s17, 0
      %p95 = por %p93, %p94
      %p96 = scmp.ne.s32.totalorder %s88, %s90
      %p97 = scmp.eq.s32.totalorder %s22, 3
      %p98 = por %p96, %p97
      %p99 = scmp.ne.s32.totalorder %s90, %s91
      %p100 = scmp.eq.s32.totalorder %s22, 0
      %p101 = por %p99, %p100
      %p102 = scmp.ne.s32.totalorder %s90, %s91
      %p103 = scmp.eq.s32.totalorder %s23, 3
      %p104 = por %p102, %p103
      %p106 = scmp.ne.s32.totalorder %s91, %s105
      %p107 = scmp.eq.s32.totalorder %s23, 0
      %p108 = por %p106, %p107
      %s110 = sadd.s32 %s109, 1
      %p113 = scmp.eq.s32.totalorder %s17, 3
      %p114 = scmp.ne.s32.totalorder %s109, %s111
      %p115 = scmp.eq.s32.totalorder %s17, 0
      %p116 = por %p114, %p115
      %p117 = scmp.ne.s32.totalorder %s109, %s111
      %p118 = scmp.eq.s32.totalorder %s22, 3
      %p119 = por %p117, %p118
      %p120 = scmp.ne.s32.totalorder %s111, %s112
      %p121 = scmp.eq.s32.totalorder %s22, 0
      %p122 = por %p120, %p121
      %p123 = scmp.ne.s32.totalorder %s111, %s112
      %p124 = scmp.eq.s32.totalorder %s23, 3
      %p125 = por %p123, %p124
      %p127 = scmp.ne.s32.totalorder %s112, %s126
      %p128 = scmp.eq.s32.totalorder %s23, 0
      %p129 = por %p127, %p128
      %s131 = sadd.s32 %s130, 1
      %p134 = scmp.eq.s32.totalorder %s17, 3
      %p135 = scmp.ne.s32.totalorder %s130, %s132
      %p136 = scmp.eq.s32.totalorder %s17, 0
      %p137 = por %p135, %p136
      %p138 = scmp.ne.s32.totalorder %s130, %s132
      %p139 = scmp.eq.s32.totalorder %s22, 3
      %p140 = por %p138, %p139
      %p141 = scmp.ne.s32.totalorder %s132, %s133
      %p142 = scmp.eq.s32.totalorder %s22, 0
      %p143 = por %p141, %p142
      %p144 = scmp.ne.s32.totalorder %s132, %s133
      %p145 = scmp.eq.s32.totalorder %s23, 3
      %p146 = por %p144, %p145
      %p148 = scmp.ne.s32.totalorder %s133, %s147
      %p149 = scmp.eq.s32.totalorder %s23, 0
      %p150 = por %p148, %p149
      %s152 = sadd.s32 %s151, 1
      %p155 = scmp.eq.s32.totalorder %s17, 3
      %p156 = scmp.ne.s32.totalorder %s151, %s153
      %p157 = scmp.eq.s32.totalorder %s17, 0
      %p158 = por %p156, %p157
      %p159 = scmp.ne.s32.totalorder %s151, %s153
      %p160 = scmp.eq.s32.totalorder %s22, 3
      %p161 = por %p159, %p160
      %p162 = scmp.ne.s32.totalorder %s153, %s154
      %p163 = scmp.eq.s32.totalorder %s22, 0
      %p164 = por %p162, %p163
      %p165 = scmp.ne.s32.totalorder %s153, %s154
      %p166 = scmp.eq.s32.totalorder %s23, 3
      %p167 = por %p165, %p166
      %p169 = scmp.ne.s32.totalorder %s154, %s168
      %p170 = scmp.eq.s32.totalorder %s23, 0
      %p171 = por %p169, %p170
      %s173 = sadd.s32 %s172, 1
      %p176 = scmp.eq.s32.totalorder %s17, 3
      %p177 = scmp.ne.s32.totalorder %s172, %s174
      %p178 = scmp.eq.s32.totalorder %s17, 0
      %p179 = por %p177, %p178
      %p180 = scmp.ne.s32.totalorder %s172, %s174
      %p181 = scmp.eq.s32.totalorder %s22, 3
      %p182 = por %p180, %p181
      %p183 = scmp.ne.s32.totalorder %s174, %s175
      %p184 = scmp.eq.s32.totalorder %s22, 0
      %p185 = por %p183, %p184
      %p186 = scmp.ne.s32.totalorder %s174, %s175
      %p187 = scmp.eq.s32.totalorder %s23, 3
      %p188 = por %p186, %p187
      %p190 = scmp.ne.s32.totalorder %s175, %s189
      %p191 = scmp.eq.s32.totalorder %s23, 0
      %p192 = por %p190, %p191
      %s193 = ssub.s32 %s24, %s36
      %s194 = ssub.s32 %s25, %s32
      %s195 = sor.u32 %s193, %s194
      %p196 = scmp.eq.s32.totalorder %s195, 0
      %s198 = sadd.s32 %s197, 1
      %s199 = scalar_select %p196, %s197, %s198
      %p202 = pneg %p196
      %p203 = scmp.eq.s32.totalorder %s17, 3
      %p204 = por %p202, %p203
      %p205 = scmp.ne.s32.totalorder %s197, %s200
      %p206 = scmp.eq.s32.totalorder %s17, 0
      %p207 = por %p205, %p206
      %p208 = scmp.ne.s32.totalorder %s197, %s200
      %p209 = scmp.eq.s32.totalorder %s22, 3
      %p210 = por %p208, %p209
      %p211 = scmp.ne.s32.totalorder %s200, %s201
      %p212 = scmp.eq.s32.totalorder %s22, 0
      %p213 = por %p211, %p212
      %p214 = scmp.ne.s32.totalorder %s200, %s201
      %p215 = scmp.eq.s32.totalorder %s23, 3
      %p216 = por %p214, %p215
      %p218 = scmp.ne.s32.totalorder %s201, %s217
      %p219 = scmp.eq.s32.totalorder %s23, 0
      %p220 = por %p218, %p219
      %s221 = ssub.s32 %s24, %s36
      %s222 = ssub.s32 %s25, %s32
      %s223 = sor.u32 %s221, %s222
      %p224 = scmp.eq.s32.totalorder %s223, 0
      %s226 = sadd.s32 %s225, 1
      %s227 = scalar_select %p224, %s225, %s226
      %p230 = pneg %p224
      %p231 = scmp.eq.s32.totalorder %s17, 3
      %p232 = por %p230, %p231
      %p233 = scmp.ne.s32.totalorder %s225, %s228
      %p234 = scmp.eq.s32.totalorder %s17, 0
      %p235 = por %p233, %p234
      %p236 = scmp.ne.s32.totalorder %s225, %s228
      %p237 = scmp.eq.s32.totalorder %s22, 3
      %p238 = por %p236, %p237
      %p239 = scmp.ne.s32.totalorder %s228, %s229
      %p240 = scmp.eq.s32.totalorder %s22, 0
      %p241 = por %p239, %p240
      %p242 = scmp.ne.s32.totalorder %s228, %s229
      %p243 = scmp.eq.s32.totalorder %s23, 3
      %p244 = por %p242, %p243
      %p246 = scmp.ne.s32.totalorder %s229, %s245
      %p247 = scmp.eq.s32.totalorder %s23, 0
      %p248 = por %p246, %p247
      %p249 = scmp.le.s32.totalorder 1, %s17
      %p250 = scmp.lt.s32.totalorder %s17, 5
      %p251 = pnand %p249, %p250
      %p252 = pneg %p251
      // Predicated region
      $region9: #{tpu_custom_call.1} parent=5 // pred_check
        _
      $region10: #{tpu_custom_call.1} parent=5 // pred_check_branch
        %254 = sbr.rel (%p251) target = $region12
      $region11: #{tpu_custom_call.1} parent=5 // pred_region
        %s255 = ssub.s32 %s17, 1
        // Predicated region
        $region13: #{tpu_custom_call.1} parent=11 // pred_check
          %p256 = pneg %p80
        $region14: #{tpu_custom_call.1} parent=11 // pred_check_branch
          %258 = sbr.rel (%p256) target = $region16
        $region15: #{tpu_custom_call.1} parent=11 // pred_region
          _
        $region16: #{tpu_custom_call.1} parent=11 // pred_fallthru
          _
        // Predicated region
        $region17: #{tpu_custom_call.1} parent=11 // pred_check
          %p259 = pneg %p101
        $region18: #{tpu_custom_call.1} parent=11 // pred_check_branch
          %261 = sbr.rel (%p259) target = $region20
        $region19: #{tpu_custom_call.1} parent=11 // pred_region
          _
        $region20: #{tpu_custom_call.1} parent=11 // pred_fallthru
          _
        // Predicated region
        $region21: #{tpu_custom_call.1} parent=11 // pred_check
          %p262 = pneg %p122
        $region22: #{tpu_custom_call.1} parent=11 // pred_check_branch
          %264 = sbr.rel (%p262) target = $region24
        $region23: #{tpu_custom_call.1} parent=11 // pred_region
          _
        $region24: #{tpu_custom_call.1} parent=11 // pred_fallthru
          _
        // Predicated region
        $region25: #{tpu_custom_call.1} parent=11 // pred_check
          %p265 = pneg %p143
        $region26: #{tpu_custom_call.1} parent=11 // pred_check_branch
          %267 = sbr.rel (%p265) target = $region28
        $region27: #{tpu_custom_call.1} parent=11 // pred_region
          _
        $region28: #{tpu_custom_call.1} parent=11 // pred_fallthru
          _
        // Predicated region
        $region29: #{tpu_custom_call.1} parent=11 // pred_check
          %p268 = pneg %p164
        $region30: #{tpu_custom_call.1} parent=11 // pred_check_branch
          %270 = sbr.rel (%p268) target = $region32
        $region31: #{tpu_custom_call.1} parent=11 // pred_region
          _
        $region32: #{tpu_custom_call.1} parent=11 // pred_fallthru
          _
        // Predicated region
        $region33: #{tpu_custom_call.1} parent=11 // pred_check
          %p271 = pneg %p185
        $region34: #{tpu_custom_call.1} parent=11 // pred_check_branch
          %273 = sbr.rel (%p271) target = $region36
        $region35: #{tpu_custom_call.1} parent=11 // pred_region
          _
        $region36: #{tpu_custom_call.1} parent=11 // pred_fallthru
          _
      $region12: #{tpu_custom_call.1} parent=5 // pred_fallthru
        _
      %p274 = scmp.lt.s32.totalorder %s17, 4
      // Predicated region
      $region37: #{tpu_custom_call.1} parent=5 // pred_check
        %p275 = pneg %p274
      $region38: #{tpu_custom_call.1} parent=5 // pred_check_branch
        %277 = sbr.rel (%p275) target = $region40
      $region39: #{tpu_custom_call.1} parent=5 // pred_region
        // Predicated region
        $region41: #{tpu_custom_call.1} parent=39 // pred_check
          %p278 = pneg %p53
        $region42: #{tpu_custom_call.1} parent=39 // pred_check_branch
          %280 = sbr.rel (%p278) target = $region44
        $region43: #{tpu_custom_call.1} parent=39 // pred_region
          %s281 = smul.u32 %s24, 2
          %s282 = sadd.s32 %s281, %s25
          %p283 = scmp.lt.s32.totalorder %s282, 3
          %s284 = scalar_select %p283, %s282, 3
          %s285 = smul.addr %s284, 30
          %s286 = smul.addr %s285, 8
          %s287 = scalar_lea.vmem %s0, %s286
          %s288 = smul.u32 %s24, 2
          %s289 = sadd.s32 %s288, %s25
        $region44: #{tpu_custom_call.1} parent=39 // pred_fallthru
          _
        // Predicated region
        $region45: #{tpu_custom_call.1} parent=39 // pred_check
          %p290 = pneg %p207
        $region46: #{tpu_custom_call.1} parent=39 // pred_check_branch
          %292 = sbr.rel (%p290) target = $region48
        $region47: #{tpu_custom_call.1} parent=39 // pred_region
          %p293 = scmp.lt.s32.totalorder %s24, 1
          %s294 = scalar_select %p293, %s24, 1
          %p295 = scmp.lt.s32.totalorder %s25, 1
          %s296 = scalar_select %p295, %s25, 1
          %s297 = smul.addr %s294, 2
          %s298 = sadd.s32 %s296, %s297
          %s299 = smul.addr %s298, 4
          %s300 = scalar_lea.vmem %s7, %s299
        $region48: #{tpu_custom_call.1} parent=39 // pred_fallthru
          _
      $region40: #{tpu_custom_call.1} parent=5 // pred_fallthru
        _
      %p301 = scmp.le.s32.totalorder 1, %s17
      %p302 = scmp.lt.s32.totalorder %s17, 5
      %p303 = pnand %p301, %p302
      %p304 = pneg %p303
      // Predicated region
      $region49: #{tpu_custom_call.1} parent=5 // pred_check
        _
      $region50: #{tpu_custom_call.1} parent=5 // pred_check_branch
        %306 = sbr.rel (%p303) target = $region52
      $region51: #{tpu_custom_call.1} parent=5 // pred_region
        %s307 = ssub.s32 %s17, 1
        %s308 = smul.u32 %s26, 2
        %s309 = sadd.s32 %s308, %s27
        %p310 = scmp.lt.s32.totalorder %s309, 3
        %s311 = scalar_select %p310, %s309, 3
        %s312 = smul.addr %s311, 30
        %s313 = smul.addr %s312, 8
        %s314 = scalar_lea.vmem %s0, %s313
        %p315 = pneg %p59
        %p316 = pneg %p56
        %p317 = pneg %p80
        %p318 = pneg %p77
        %p319 = pneg %p101
        %p320 = pneg %p98
        %p321 = pneg %p122
        %p322 = pneg %p119
        %p323 = pneg %p143
        %p324 = pneg %p140
        %p325 = pneg %p164
        %p326 = pneg %p161
        %p327 = pneg %p185
        %p328 = pneg %p182
        %p329 = scmp.lt.s32.totalorder %s26, 1
        %s330 = scalar_select %p329, %s26, 1
        %p331 = scmp.lt.s32.totalorder %s27, 1
        %s332 = scalar_select %p331, %s27, 1
        %s333 = smul.addr %s330, 2
        %s334 = sadd.s32 %s332, %s333
        %s335 = smul.addr %s334, 4
        %s336 = scalar_lea.vmem %s7, %s335
        %p337 = pneg %p213
        %p338 = pneg %p210
        %p339 = pneg %p241
        %p340 = pneg %p238
        %s341 = sand.u32 %s228, 1
        %s342 = scalar_lea.sflag [#allocation3], %s341
        %s343 = sand.u32 %s228, 1
        %s344 = smul.addr %s343, 4
        %s345 = scalar_lea.vmem [#allocation2], %s344
        %s346 = smul.u32 %s26, 2
        %s347 = sadd.s32 %s346, %s27
        %p348 = scmp.lt.s32.totalorder %s347, 3
        %s349 = scalar_select %p348, %s347, 3
        %s350 = smul.addr %s349, 30
        %s351 = smul.addr %s350, 8
        %s352 = scalar_lea.vmem %s0, %s351
        %s353 = smul.u32 %s26, 2
        %s354 = sadd.s32 %s353, %s27
        %p355 = scmp.lt.s32.totalorder %s26, 1
        %s356 = scalar_select %p355, %s26, 1
        %p357 = scmp.lt.s32.totalorder %s27, 1
        %s358 = scalar_select %p357, %s27, 1
        %s359 = smul.addr %s356, 2
        %s360 = sadd.s32 %s358, %s359
        %s361 = smul.addr %s360, 4
        %s362 = scalar_lea.vmem %s7, %s361
        %v363 = vld [vmem:[%s352] sm:$0xff]
        %v364 = vld [vmem:[%s352 + $0x8] sm:$0xff]
        %v365 = vld [vmem:[%s352 + $0x10] sm:$0x3]
        %v366 = vld [vmem:[%s352 + $0x18] sm:$0xff]
        %v367 = vld [vmem:[%s352 + $0x20] sm:$0xff]
        %v368 = vld [vmem:[%s352 + $0x28] sm:$0x3]
        %v369 = vld [vmem:[%s352 + $0x30] sm:$0xff]
        %v370 = vld [vmem:[%s352 + $0x38] sm:$0xff]
        %v371 = vld [vmem:[%s352 + $0x40] sm:$0x3]
        %v372 = vld [vmem:[%s352 + $0x48] sm:$0xff]
        %v373 = vld [vmem:[%s352 + $0x50] sm:$0xff]
        %v374 = vld [vmem:[%s352 + $0x58] sm:$0x3]
        %v375 = vld [vmem:[%s352 + $0x60] sm:$0xff]
        %v376 = vld [vmem:[%s352 + $0x68] sm:$0xff]
        %v377 = vld [vmem:[%s352 + $0x70] sm:$0x3]
        %v378 = vld [vmem:[%s352 + $0x78] sm:$0xff]
        %v379 = vld [vmem:[%s352 + $0x80] sm:$0xff]
        %v380 = vld [vmem:[%s352 + $0x88] sm:$0x3]
        %v381 = vld [vmem:[%s352 + $0x90] sm:$0xff]
        %v382 = vld [vmem:[%s352 + $0x98] sm:$0xff]
        %v383 = vld [vmem:[%s352 + $0xa0] sm:$0x3]
        %v384 = vld [vmem:[%s352 + $0xa8] sm:$0xff]
        %v385 = vld [vmem:[%s352 + $0xb0] sm:$0xff]
        %v386 = vld [vmem:[%s352 + $0xb8] sm:$0x3]
        %v387 = vld [vmem:[%s352 + $0xc0] sm:$0xff]
        %v388 = vld [vmem:[%s352 + $0xc8] sm:$0xff]
        %v389 = vld [vmem:[%s352 + $0xd0] sm:$0x3]
        %v390 = vld [vmem:[%s352 + $0xd8] sm:$0xff]
        %v391 = vld [vmem:[%s352 + $0xe0] sm:$0xff]
        %v392 = vld [vmem:[%s352 + $0xe8] sm:$0x3]
        %v393 = vld [vmem:[%s1] sm:$0xf]
        %v394 = vld [vmem:[%s2] sm:$0x1]
        %v396 = vlaneseq
        %v397 = vshrl.u32 %v396, 7
        %v398 = vsub.s32 0, %v397
        %v399 = vrot.slane %v394, %v398
        %v401 = vadd.f32 %v399, 0.0
        %403 = vset.pattern.permute.xlu0 0
        %404 = vperm.xlu0 %403, %v363
        %v405 = vpop.permute.xlu0 %404
        %408 = vset.pattern.permute.xlu0 0
        %409 = vperm.xlu0 %408, %v364
        %v410 = vpop.permute.xlu0 %409
        %413 = vset.pattern.permute.xlu0 0
        %414 = vperm.xlu0 %413, %v365
        %v415 = vpop.permute.xlu0 %414
        %418 = vset.pattern.permute.xlu0 0
        %419 = vperm.xlu0 %418, %v366
        %v420 = vpop.permute.xlu0 %419
        %423 = vset.pattern.permute.xlu0 0
        %424 = vperm.xlu0 %423, %v367
        %v425 = vpop.permute.xlu0 %424
        %428 = vset.pattern.permute.xlu0 0
        %429 = vperm.xlu0 %428, %v368
        %v430 = vpop.permute.xlu0 %429
        %433 = vset.pattern.permute.xlu0 0
        %434 = vperm.xlu0 %433, %v369
        %v435 = vpop.permute.xlu0 %434
        %438 = vset.pattern.permute.xlu0 0
        %439 = vperm.xlu0 %438, %v370
        %v440 = vpop.permute.xlu0 %439
        %443 = vset.pattern.permute.xlu0 0
        %444 = vperm.xlu0 %443, %v371
        %v445 = vpop.permute.xlu0 %444
        %448 = vset.pattern.permute.xlu0 0
        %449 = vperm.xlu0 %448, %v372
        %v450 = vpop.permute.xlu0 %449
        %453 = vset.pattern.permute.xlu0 0
        %454 = vperm.xlu0 %453, %v373
        %v455 = vpop.permute.xlu0 %454
        %458 = vset.pattern.permute.xlu0 0
        %459 = vperm.xlu0 %458, %v374
        %v460 = vpop.permute.xlu0 %459
        %463 = vset.pattern.permute.xlu0 0
        %464 = vperm.xlu0 %463, %v375
        %v465 = vpop.permute.xlu0 %464
        %468 = vset.pattern.permute.xlu0 0
        %469 = vperm.xlu0 %468, %v376
        %v470 = vpop.permute.xlu0 %469
        %473 = vset.pattern.permute.xlu0 0
        %474 = vperm.xlu0 %473, %v377
        %v475 = vpop.permute.xlu0 %474
        %478 = vset.pattern.permute.xlu0 0
        %479 = vperm.xlu0 %478, %v378
        %v480 = vpop.permute.xlu0 %479
        %483 = vset.pattern.permute.xlu0 0
        %484 = vperm.xlu0 %483, %v379
        %v485 = vpop.permute.xlu0 %484
        %488 = vset.pattern.permute.xlu0 0
        %489 = vperm.xlu0 %488, %v380
        %v490 = vpop.permute.xlu0 %489
        %493 = vset.pattern.permute.xlu0 0
        %494 = vperm.xlu0 %493, %v381
        %v495 = vpop.permute.xlu0 %494
        %498 = vset.pattern.permute.xlu0 0
        %499 = vperm.xlu0 %498, %v382
        %v500 = vpop.permute.xlu0 %499
        %503 = vset.pattern.permute.xlu0 0
        %504 = vperm.xlu0 %503, %v383
        %v505 = vpop.permute.xlu0 %504
        %508 = vset.pattern.permute.xlu0 0
        %509 = vperm.xlu0 %508, %v384
        %v510 = vpop.permute.xlu0 %509
        %513 = vset.pattern.permute.xlu0 0
        %514 = vperm.xlu0 %513, %v385
        %v515 = vpop.permute.xlu0 %514
        %518 = vset.pattern.permute.xlu0 0
        %519 = vperm.xlu0 %518, %v386
        %v520 = vpop.permute.xlu0 %519
        %523 = vset.pattern.permute.xlu0 0
        %524 = vperm.xlu0 %523, %v387
        %v525 = vpop.permute.xlu0 %524
        %528 = vset.pattern.permute.xlu0 0
        %529 = vperm.xlu0 %528, %v388
        %v530 = vpop.permute.xlu0 %529
        %533 = vset.pattern.permute.xlu0 0
        %534 = vperm.xlu0 %533, %v389
        %v535 = vpop.permute.xlu0 %534
        %538 = vset.pattern.permute.xlu0 0
        %539 = vperm.xlu0 %538, %v390
        %v540 = vpop.permute.xlu0 %539
        %543 = vset.pattern.permute.xlu0 0
        %544 = vperm.xlu0 %543, %v391
        %v545 = vpop.permute.xlu0 %544
        %548 = vset.pattern.permute.xlu0 0
        %549 = vperm.xlu0 %548, %v392
        %v550 = vpop.permute.xlu0 %549
        %v552 = vlaneseq
        %v553 = vshrl.u32 %v552, 7
        %v554 = vsub.s32 0, %v553
        %v555 = vrot.slane %v393, %v554
        %v556 = vmul.f32 %v405, %v555
        %v557 = vmul.f32 %v410, %v555
        %v558 = vmul.f32 %v415, %v555
        %v559 = vmul.f32 %v420, %v555
        %v560 = vmul.f32 %v425, %v555
        %v561 = vmul.f32 %v430, %v555
        %v562 = vmul.f32 %v435, %v555
        %v563 = vmul.f32 %v440, %v555
        %v564 = vmul.f32 %v445, %v555
        %v565 = vmul.f32 %v450, %v555
        %v566 = vmul.f32 %v455, %v555
        %v567 = vmul.f32 %v460, %v555
        %v568 = vmul.f32 %v465, %v555
        %v569 = vmul.f32 %v470, %v555
        %v570 = vmul.f32 %v475, %v555
        %v571 = vmul.f32 %v480, %v555
        %v572 = vmul.f32 %v485, %v555
        %v573 = vmul.f32 %v490, %v555
        %v574 = vmul.f32 %v495, %v555
        %v575 = vmul.f32 %v500, %v555
        %v576 = vmul.f32 %v505, %v555
        %v577 = vmul.f32 %v510, %v555
        %v578 = vmul.f32 %v515, %v555
        %v579 = vmul.f32 %v520, %v555
        %v580 = vmul.f32 %v525, %v555
        %v581 = vmul.f32 %v530, %v555
        %v582 = vmul.f32 %v535, %v555
        %v583 = vmul.f32 %v540, %v555
        %v584 = vmul.f32 %v545, %v555
        %v585 = vmul.f32 %v550, %v555
        %v586 = vadd.f32 %v401, %v556
        %v587 = vadd.f32 %v401, %v557
        %v588 = vadd.f32 %v401, %v558
        %v589 = vadd.f32 %v401, %v559
        %v590 = vadd.f32 %v401, %v560
        %v591 = vadd.f32 %v401, %v561
        %v592 = vadd.f32 %v401, %v562
        %v593 = vadd.f32 %v401, %v563
        %v594 = vadd.f32 %v401, %v564
        %v595 = vadd.f32 %v401, %v565
        %v596 = vadd.f32 %v401, %v566
        %v597 = vadd.f32 %v401, %v567
        %v598 = vadd.f32 %v401, %v568
        %v599 = vadd.f32 %v401, %v569
        %v600 = vadd.f32 %v401, %v570
        %v601 = vadd.f32 %v401, %v571
        %v602 = vadd.f32 %v401, %v572
        %v603 = vadd.f32 %v401, %v573
        %v604 = vadd.f32 %v401, %v574
        %v605 = vadd.f32 %v401, %v575
        %v606 = vadd.f32 %v401, %v576
        %v607 = vadd.f32 %v401, %v577
        %v608 = vadd.f32 %v401, %v578
        %v609 = vadd.f32 %v401, %v579
        %v610 = vadd.f32 %v401, %v580
        %v611 = vadd.f32 %v401, %v581
        %v612 = vadd.f32 %v401, %v582
        %v613 = vadd.f32 %v401, %v583
        %v614 = vadd.f32 %v401, %v584
        %v615 = vadd.f32 %v401, %v585
        %616 = vset.pattern.permute.xlu0 1
        %617 = vperm.xlu0 %616, %v363
        %v618 = vpop.permute.xlu0 %617
        %620 = vset.pattern.permute.xlu0 1
        %621 = vperm.xlu0 %620, %v364
        %v622 = vpop.permute.xlu0 %621
        %624 = vset.pattern.permute.xlu0 1
        %625 = vperm.xlu0 %624, %v365
        %v626 = vpop.permute.xlu0 %625
        %628 = vset.pattern.permute.xlu0 1
        %629 = vperm.xlu0 %628, %v366
        %v630 = vpop.permute.xlu0 %629
        %632 = vset.pattern.permute.xlu0 1
        %633 = vperm.xlu0 %632, %v367
        %v634 = vpop.permute.xlu0 %633
        %636 = vset.pattern.permute.xlu0 1
        %637 = vperm.xlu0 %636, %v368
        %v638 = vpop.permute.xlu0 %637
        %640 = vset.pattern.permute.xlu0 1
        %641 = vperm.xlu0 %640, %v369
        %v642 = vpop.permute.xlu0 %641
        %644 = vset.pattern.permute.xlu0 1
        %645 = vperm.xlu0 %644, %v370
        %v646 = vpop.permute.xlu0 %645
        %648 = vset.pattern.permute.xlu0 1
        %649 = vperm.xlu0 %648, %v371
        %v650 = vpop.permute.xlu0 %649
        %652 = vset.pattern.permute.xlu0 1
        %653 = vperm.xlu0 %652, %v372
        %v654 = vpop.permute.xlu0 %653
        %656 = vset.pattern.permute.xlu0 1
        %657 = vperm.xlu0 %656, %v373
        %v658 = vpop.permute.xlu0 %657
        %660 = vset.pattern.permute.xlu0 1
        %661 = vperm.xlu0 %660, %v374
        %v662 = vpop.permute.xlu0 %661
        %664 = vset.pattern.permute.xlu0 1
        %665 = vperm.xlu0 %664, %v375
        %v666 = vpop.permute.xlu0 %665
        %668 = vset.pattern.permute.xlu0 1
        %669 = vperm.xlu0 %668, %v376
        %v670 = vpop.permute.xlu0 %669
        %672 = vset.pattern.permute.xlu0 1
        %673 = vperm.xlu0 %672, %v377
        %v674 = vpop.permute.xlu0 %673
        %676 = vset.pattern.permute.xlu0 1
        %677 = vperm.xlu0 %676, %v378
        %v678 = vpop.permute.xlu0 %677
        %680 = vset.pattern.permute.xlu0 1
        %681 = vperm.xlu0 %680, %v379
        %v682 = vpop.permute.xlu0 %681
        %684 = vset.pattern.permute.xlu0 1
        %685 = vperm.xlu0 %684, %v380
        %v686 = vpop.permute.xlu0 %685
        %688 = vset.pattern.permute.xlu0 1
        %689 = vperm.xlu0 %688, %v381
        %v690 = vpop.permute.xlu0 %689
        %692 = vset.pattern.permute.xlu0 1
        %693 = vperm.xlu0 %692, %v382
        %v694 = vpop.permute.xlu0 %693
        %696 = vset.pattern.permute.xlu0 1
        %697 = vperm.xlu0 %696, %v383
        %v698 = vpop.permute.xlu0 %697
        %700 = vset.pattern.permute.xlu0 1
        %701 = vperm.xlu0 %700, %v384
        %v702 = vpop.permute.xlu0 %701
        %704 = vset.pattern.permute.xlu0 1
        %705 = vperm.xlu0 %704, %v385
        %v706 = vpop.permute.xlu0 %705
        %708 = vset.pattern.permute.xlu0 1
        %709 = vperm.xlu0 %708, %v386
        %v710 = vpop.permute.xlu0 %709
        %712 = vset.pattern.permute.xlu0 1
        %713 = vperm.xlu0 %712, %v387
        %v714 = vpop.permute.xlu0 %713
        %716 = vset.pattern.permute.xlu0 1
        %717 = vperm.xlu0 %716, %v388
        %v718 = vpop.permute.xlu0 %717
        %720 = vset.pattern.permute.xlu0 1
        %721 = vperm.xlu0 %720, %v389
        %v722 = vpop.permute.xlu0 %721
        %724 = vset.pattern.permute.xlu0 1
        %725 = vperm.xlu0 %724, %v390
        %v726 = vpop.permute.xlu0 %725
        %728 = vset.pattern.permute.xlu0 1
        %729 = vperm.xlu0 %728, %v391
        %v730 = vpop.permute.xlu0 %729
        %732 = vset.pattern.permute.xlu0 1
        %733 = vperm.xlu0 %732, %v392
        %v734 = vpop.permute.xlu0 %733
        %v736 = vlaneseq
        %v737 = vshrl.u32 %v736, 7
        %v738 = vsub.s32 1, %v737
        %v739 = vrot.slane %v393, %v738
        %v740 = vmul.f32 %v618, %v739
        %v741 = vmul.f32 %v622, %v739
        %v742 = vmul.f32 %v626, %v739
        %v743 = vmul.f32 %v630, %v739
        %v744 = vmul.f32 %v634, %v739
        %v745 = vmul.f32 %v638, %v739
        %v746 = vmul.f32 %v642, %v739
        %v747 = vmul.f32 %v646, %v739
        %v748 = vmul.f32 %v650, %v739
        %v749 = vmul.f32 %v654, %v739
        %v750 = vmul.f32 %v658, %v739
        %v751 = vmul.f32 %v662, %v739
        %v752 = vmul.f32 %v666, %v739
        %v753 = vmul.f32 %v670, %v739
        %v754 = vmul.f32 %v674, %v739
        %v755 = vmul.f32 %v678, %v739
        %v756 = vmul.f32 %v682, %v739
        %v757 = vmul.f32 %v686, %v739
        %v758 = vmul.f32 %v690, %v739
        %v759 = vmul.f32 %v694, %v739
        %v760 = vmul.f32 %v698, %v739
        %v761 = vmul.f32 %v702, %v739
        %v762 = vmul.f32 %v706, %v739
        %v763 = vmul.f32 %v710, %v739
        %v764 = vmul.f32 %v714, %v739
        %v765 = vmul.f32 %v718, %v739
        %v766 = vmul.f32 %v722, %v739
        %v767 = vmul.f32 %v726, %v739
        %v768 = vmul.f32 %v730, %v739
        %v769 = vmul.f32 %v734, %v739
        %v770 = vadd.f32 %v586, %v740
        %v771 = vadd.f32 %v587, %v741
        %v772 = vadd.f32 %v588, %v742
        %v773 = vadd.f32 %v589, %v743
        %v774 = vadd.f32 %v590, %v744
        %v775 = vadd.f32 %v591, %v745
        %v776 = vadd.f32 %v592, %v746
        %v777 = vadd.f32 %v593, %v747
        %v778 = vadd.f32 %v594, %v748
        %v779 = vadd.f32 %v595, %v749
        %v780 = vadd.f32 %v596, %v750
        %v781 = vadd.f32 %v597, %v751
        %v782 = vadd.f32 %v598, %v752
        %v783 = vadd.f32 %v599, %v753
        %v784 = vadd.f32 %v600, %v754
        %v785 = vadd.f32 %v601, %v755
        %v786 = vadd.f32 %v602, %v756
        %v787 = vadd.f32 %v603, %v757
        %v788 = vadd.f32 %v604, %v758
        %v789 = vadd.f32 %v605, %v759
        %v790 = vadd.f32 %v606, %v760
        %v791 = vadd.f32 %v607, %v761
        %v792 = vadd.f32 %v608, %v762
        %v793 = vadd.f32 %v609, %v763
        %v794 = vadd.f32 %v610, %v764
        %v795 = vadd.f32 %v611, %v765
        %v796 = vadd.f32 %v612, %v766
        %v797 = vadd.f32 %v613, %v767
        %v798 = vadd.f32 %v614, %v768
        %v799 = vadd.f32 %v615, %v769
        %800 = vset.pattern.permute.xlu0 2
        %801 = vperm.xlu0 %800, %v363
        %v802 = vpop.permute.xlu0 %801
        %804 = vset.pattern.permute.xlu0 2
        %805 = vperm.xlu0 %804, %v364
        %v806 = vpop.permute.xlu0 %805
        %808 = vset.pattern.permute.xlu0 2
        %809 = vperm.xlu0 %808, %v365
        %v810 = vpop.permute.xlu0 %809
        %812 = vset.pattern.permute.xlu0 2
        %813 = vperm.xlu0 %812, %v366
        %v814 = vpop.permute.xlu0 %813
        %816 = vset.pattern.permute.xlu0 2
        %817 = vperm.xlu0 %816, %v367
        %v818 = vpop.permute.xlu0 %817
        %820 = vset.pattern.permute.xlu0 2
        %821 = vperm.xlu0 %820, %v368
        %v822 = vpop.permute.xlu0 %821
        %824 = vset.pattern.permute.xlu0 2
        %825 = vperm.xlu0 %824, %v369
        %v826 = vpop.permute.xlu0 %825
        %828 = vset.pattern.permute.xlu0 2
        %829 = vperm.xlu0 %828, %v370
        %v830 = vpop.permute.xlu0 %829
        %832 = vset.pattern.permute.xlu0 2
        %833 = vperm.xlu0 %832, %v371
        %v834 = vpop.permute.xlu0 %833
        %836 = vset.pattern.permute.xlu0 2
        %837 = vperm.xlu0 %836, %v372
        %v838 = vpop.permute.xlu0 %837
        %840 = vset.pattern.permute.xlu0 2
        %841 = vperm.xlu0 %840, %v373
        %v842 = vpop.permute.xlu0 %841
        %844 = vset.pattern.permute.xlu0 2
        %845 = vperm.xlu0 %844, %v374
        %v846 = vpop.permute.xlu0 %845
        %848 = vset.pattern.permute.xlu0 2
        %849 = vperm.xlu0 %848, %v375
        %v850 = vpop.permute.xlu0 %849
        %852 = vset.pattern.permute.xlu0 2
        %853 = vperm.xlu0 %852, %v376
        %v854 = vpop.permute.xlu0 %853
        %856 = vset.pattern.permute.xlu0 2
        %857 = vperm.xlu0 %856, %v377
        %v858 = vpop.permute.xlu0 %857
        %860 = vset.pattern.permute.xlu0 2
        %861 = vperm.xlu0 %860, %v378
        %v862 = vpop.permute.xlu0 %861
        %864 = vset.pattern.permute.xlu0 2
        %865 = vperm.xlu0 %864, %v379
        %v866 = vpop.permute.xlu0 %865
        %868 = vset.pattern.permute.xlu0 2
        %869 = vperm.xlu0 %868, %v380
        %v870 = vpop.permute.xlu0 %869
        %872 = vset.pattern.permute.xlu0 2
        %873 = vperm.xlu0 %872, %v381
        %v874 = vpop.permute.xlu0 %873
        %876 = vset.pattern.permute.xlu0 2
        %877 = vperm.xlu0 %876, %v382
        %v878 = vpop.permute.xlu0 %877
        %880 = vset.pattern.permute.xlu0 2
        %881 = vperm.xlu0 %880, %v383
        %v882 = vpop.permute.xlu0 %881
        %884 = vset.pattern.permute.xlu0 2
        %885 = vperm.xlu0 %884, %v384
        %v886 = vpop.permute.xlu0 %885
        %888 = vset.pattern.permute.xlu0 2
        %889 = vperm.xlu0 %888, %v385
        %v890 = vpop.permute.xlu0 %889
        %892 = vset.pattern.permute.xlu0 2
        %893 = vperm.xlu0 %892, %v386
        %v894 = vpop.permute.xlu0 %893
        %896 = vset.pattern.permute.xlu0 2
        %897 = vperm.xlu0 %896, %v387
        %v898 = vpop.permute.xlu0 %897
        %900 = vset.pattern.permute.xlu0 2
        %901 = vperm.xlu0 %900, %v388
        %v902 = vpop.permute.xlu0 %901
        %904 = vset.pattern.permute.xlu0 2
        %905 = vperm.xlu0 %904, %v389
        %v906 = vpop.permute.xlu0 %905
        %908 = vset.pattern.permute.xlu0 2
        %909 = vperm.xlu0 %908, %v390
        %v910 = vpop.permute.xlu0 %909
        %912 = vset.pattern.permute.xlu0 2
        %913 = vperm.xlu0 %912, %v391
        %v914 = vpop.permute.xlu0 %913
        %916 = vset.pattern.permute.xlu0 2
        %917 = vperm.xlu0 %916, %v392
        %v918 = vpop.permute.xlu0 %917
        %v920 = vlaneseq
        %v921 = vshrl.u32 %v920, 7
        %v922 = vsub.s32 2, %v921
        %v923 = vrot.slane %v393, %v922
        %v924 = vmul.f32 %v802, %v923
        %v925 = vmul.f32 %v806, %v923
        %v926 = vmul.f32 %v810, %v923
        %v927 = vmul.f32 %v814, %v923
        %v928 = vmul.f32 %v818, %v923
        %v929 = vmul.f32 %v822, %v923
        %v930 = vmul.f32 %v826, %v923
        %v931 = vmul.f32 %v830, %v923
        %v932 = vmul.f32 %v834, %v923
        %v933 = vmul.f32 %v838, %v923
        %v934 = vmul.f32 %v842, %v923
        %v935 = vmul.f32 %v846, %v923
        %v936 = vmul.f32 %v850, %v923
        %v937 = vmul.f32 %v854, %v923
        %v938 = vmul.f32 %v858, %v923
        %v939 = vmul.f32 %v862, %v923
        %v940 = vmul.f32 %v866, %v923
        %v941 = vmul.f32 %v870, %v923
        %v942 = vmul.f32 %v874, %v923
        %v943 = vmul.f32 %v878, %v923
        %v944 = vmul.f32 %v882, %v923
        %v945 = vmul.f32 %v886, %v923
        %v946 = vmul.f32 %v890, %v923
        %v947 = vmul.f32 %v894, %v923
        %v948 = vmul.f32 %v898, %v923
        %v949 = vmul.f32 %v902, %v923
        %v950 = vmul.f32 %v906, %v923
        %v951 = vmul.f32 %v910, %v923
        %v952 = vmul.f32 %v914, %v923
        %v953 = vmul.f32 %v918, %v923
        %v954 = vadd.f32 %v770, %v924
        %v955 = vadd.f32 %v771, %v925
        %v956 = vadd.f32 %v772, %v926
        %v957 = vadd.f32 %v773, %v927
        %v958 = vadd.f32 %v774, %v928
        %v959 = vadd.f32 %v775, %v929
        %v960 = vadd.f32 %v776, %v930
        %v961 = vadd.f32 %v777, %v931
        %v962 = vadd.f32 %v778, %v932
        %v963 = vadd.f32 %v779, %v933
        %v964 = vadd.f32 %v780, %v934
        %v965 = vadd.f32 %v781, %v935
        %v966 = vadd.f32 %v782, %v936
        %v967 = vadd.f32 %v783, %v937
        %v968 = vadd.f32 %v784, %v938
        %v969 = vadd.f32 %v785, %v939
        %v970 = vadd.f32 %v786, %v940
        %v971 = vadd.f32 %v787, %v941
        %v972 = vadd.f32 %v788, %v942
        %v973 = vadd.f32 %v789, %v943
        %v974 = vadd.f32 %v790, %v944
        %v975 = vadd.f32 %v791, %v945
        %v976 = vadd.f32 %v792, %v946
        %v977 = vadd.f32 %v793, %v947
        %v978 = vadd.f32 %v794, %v948
        %v979 = vadd.f32 %v795, %v949
        %v980 = vadd.f32 %v796, %v950
        %v981 = vadd.f32 %v797, %v951
        %v982 = vadd.f32 %v798, %v952
        %v983 = vadd.f32 %v799, %v953
        %984 = vset.pattern.permute.xlu0 3
        %985 = vperm.xlu0 %984, %v363
        %v986 = vpop.permute.xlu0 %985
        %988 = vset.pattern.permute.xlu0 3
        %989 = vperm.xlu0 %988, %v364
        %v990 = vpop.permute.xlu0 %989
        %992 = vset.pattern.permute.xlu0 3
        %993 = vperm.xlu0 %992, %v365
        %v994 = vpop.permute.xlu0 %993
        %996 = vset.pattern.permute.xlu0 3
        %997 = vperm.xlu0 %996, %v366
        %v998 = vpop.permute.xlu0 %997
        %1000 = vset.pattern.permute.xlu0 3
        %1001 = vperm.xlu0 %1000, %v367
        %v1002 = vpop.permute.xlu0 %1001
        %1004 = vset.pattern.permute.xlu0 3
        %1005 = vperm.xlu0 %1004, %v368
        %v1006 = vpop.permute.xlu0 %1005
        %1008 = vset.pattern.permute.xlu0 3
        %1009 = vperm.xlu0 %1008, %v369
        %v1010 = vpop.permute.xlu0 %1009
        %1012 = vset.pattern.permute.xlu0 3
        %1013 = vperm.xlu0 %1012, %v370
        %v1014 = vpop.permute.xlu0 %1013
        %1016 = vset.pattern.permute.xlu0 3
        %1017 = vperm.xlu0 %1016, %v371
        %v1018 = vpop.permute.xlu0 %1017
        %1020 = vset.pattern.permute.xlu0 3
        %1021 = vperm.xlu0 %1020, %v372
        %v1022 = vpop.permute.xlu0 %1021
        %1024 = vset.pattern.permute.xlu0 3
        %1025 = vperm.xlu0 %1024, %v373
        %v1026 = vpop.permute.xlu0 %1025
        %1028 = vset.pattern.permute.xlu0 3
        %1029 = vperm.xlu0 %1028, %v374
        %v1030 = vpop.permute.xlu0 %1029
        %1032 = vset.pattern.permute.xlu0 3
        %1033 = vperm.xlu0 %1032, %v375
        %v1034 = vpop.permute.xlu0 %1033
        %1036 = vset.pattern.permute.xlu0 3
        %1037 = vperm.xlu0 %1036, %v376
        %v1038 = vpop.permute.xlu0 %1037
        %1040 = vset.pattern.permute.xlu0 3
        %1041 = vperm.xlu0 %1040, %v377
        %v1042 = vpop.permute.xlu0 %1041
        %1044 = vset.pattern.permute.xlu0 3
        %1045 = vperm.xlu0 %1044, %v378
        %v1046 = vpop.permute.xlu0 %1045
        %1048 = vset.pattern.permute.xlu0 3
        %1049 = vperm.xlu0 %1048, %v379
        %v1050 = vpop.permute.xlu0 %1049
        %1052 = vset.pattern.permute.xlu0 3
        %1053 = vperm.xlu0 %1052, %v380
        %v1054 = vpop.permute.xlu0 %1053
        %1056 = vset.pattern.permute.xlu0 3
        %1057 = vperm.xlu0 %1056, %v381
        %v1058 = vpop.permute.xlu0 %1057
        %1060 = vset.pattern.permute.xlu0 3
        %1061 = vperm.xlu0 %1060, %v382
        %v1062 = vpop.permute.xlu0 %1061
        %1064 = vset.pattern.permute.xlu0 3
        %1065 = vperm.xlu0 %1064, %v383
        %v1066 = vpop.permute.xlu0 %1065
        %1068 = vset.pattern.permute.xlu0 3
        %1069 = vperm.xlu0 %1068, %v384
        %v1070 = vpop.permute.xlu0 %1069
        %1072 = vset.pattern.permute.xlu0 3
        %1073 = vperm.xlu0 %1072, %v385
        %v1074 = vpop.permute.xlu0 %1073
        %1076 = vset.pattern.permute.xlu0 3
        %1077 = vperm.xlu0 %1076, %v386
        %v1078 = vpop.permute.xlu0 %1077
        %1080 = vset.pattern.permute.xlu0 3
        %1081 = vperm.xlu0 %1080, %v387
        %v1082 = vpop.permute.xlu0 %1081
        %1084 = vset.pattern.permute.xlu0 3
        %1085 = vperm.xlu0 %1084, %v388
        %v1086 = vpop.permute.xlu0 %1085
        %1088 = vset.pattern.permute.xlu0 3
        %1089 = vperm.xlu0 %1088, %v389
        %v1090 = vpop.permute.xlu0 %1089
        %1092 = vset.pattern.permute.xlu0 3
        %1093 = vperm.xlu0 %1092, %v390
        %v1094 = vpop.permute.xlu0 %1093
        %1096 = vset.pattern.permute.xlu0 3
        %1097 = vperm.xlu0 %1096, %v391
        %v1098 = vpop.permute.xlu0 %1097
        %1100 = vset.pattern.permute.xlu0 3
        %1101 = vperm.xlu0 %1100, %v392
        %v1102 = vpop.permute.xlu0 %1101
        %v1104 = vlaneseq
        %v1105 = vshrl.u32 %v1104, 7
        %v1106 = vsub.s32 3, %v1105
        %v1107 = vrot.slane %v393, %v1106
        %v1108 = vmul.f32 %v986, %v1107
        %v1109 = vmul.f32 %v990, %v1107
        %v1110 = vmul.f32 %v994, %v1107
        %v1111 = vmul.f32 %v998, %v1107
        %v1112 = vmul.f32 %v1002, %v1107
        %v1113 = vmul.f32 %v1006, %v1107
        %v1114 = vmul.f32 %v1010, %v1107
        %v1115 = vmul.f32 %v1014, %v1107
        %v1116 = vmul.f32 %v1018, %v1107
        %v1117 = vmul.f32 %v1022, %v1107
        %v1118 = vmul.f32 %v1026, %v1107
        %v1119 = vmul.f32 %v1030, %v1107
        %v1120 = vmul.f32 %v1034, %v1107
        %v1121 = vmul.f32 %v1038, %v1107
        %v1122 = vmul.f32 %v1042, %v1107
        %v1123 = vmul.f32 %v1046, %v1107
        %v1124 = vmul.f32 %v1050, %v1107
        %v1125 = vmul.f32 %v1054, %v1107
        %v1126 = vmul.f32 %v1058, %v1107
        %v1127 = vmul.f32 %v1062, %v1107
        %v1128 = vmul.f32 %v1066, %v1107
        %v1129 = vmul.f32 %v1070, %v1107
        %v1130 = vmul.f32 %v1074, %v1107
        %v1131 = vmul.f32 %v1078, %v1107
        %v1132 = vmul.f32 %v1082, %v1107
        %v1133 = vmul.f32 %v1086, %v1107
        %v1134 = vmul.f32 %v1090, %v1107
        %v1135 = vmul.f32 %v1094, %v1107
        %v1136 = vmul.f32 %v1098, %v1107
        %v1137 = vmul.f32 %v1102, %v1107
        %v1138 = vadd.f32 %v954, %v1108
        %v1139 = vadd.f32 %v955, %v1109
        %v1140 = vadd.f32 %v956, %v1110
        %v1141 = vadd.f32 %v957, %v1111
        %v1142 = vadd.f32 %v958, %v1112
        %v1143 = vadd.f32 %v959, %v1113
        %v1144 = vadd.f32 %v960, %v1114
        %v1145 = vadd.f32 %v961, %v1115
        %v1146 = vadd.f32 %v962, %v1116
        %v1147 = vadd.f32 %v963, %v1117
        %v1148 = vadd.f32 %v964, %v1118
        %v1149 = vadd.f32 %v965, %v1119
        %v1150 = vadd.f32 %v966, %v1120
        %v1151 = vadd.f32 %v967, %v1121
        %v1152 = vadd.f32 %v968, %v1122
        %v1153 = vadd.f32 %v969, %v1123
        %v1154 = vadd.f32 %v970, %v1124
        %v1155 = vadd.f32 %v971, %v1125
        %v1156 = vadd.f32 %v972, %v1126
        %v1157 = vadd.f32 %v973, %v1127
        %v1158 = vadd.f32 %v974, %v1128
        %v1159 = vadd.f32 %v975, %v1129
        %v1160 = vadd.f32 %v976, %v1130
        %v1161 = vadd.f32 %v977, %v1131
        %v1162 = vadd.f32 %v978, %v1132
        %v1163 = vadd.f32 %v979, %v1133
        %v1164 = vadd.f32 %v980, %v1134
        %v1165 = vadd.f32 %v981, %v1135
        %v1166 = vadd.f32 %v982, %v1136
        %v1167 = vadd.f32 %v983, %v1137
        %v1168 = vmax.f32 %v1138, 0.0
        %v1169 = vmax.f32 %v1139, 0.0
        %v1170 = vmax.f32 %v1140, 0.0
        %v1171 = vmax.f32 %v1141, 0.0
        %v1172 = vmax.f32 %v1142, 0.0
        %v1173 = vmax.f32 %v1143, 0.0
        %v1174 = vmax.f32 %v1144, 0.0
        %v1175 = vmax.f32 %v1145, 0.0
        %v1176 = vmax.f32 %v1146, 0.0
        %v1177 = vmax.f32 %v1147, 0.0
        %v1178 = vmax.f32 %v1148, 0.0
        %v1179 = vmax.f32 %v1149, 0.0
        %v1180 = vmax.f32 %v1150, 0.0
        %v1181 = vmax.f32 %v1151, 0.0
        %v1182 = vmax.f32 %v1152, 0.0
        %v1183 = vmax.f32 %v1153, 0.0
        %v1184 = vmax.f32 %v1154, 0.0
        %v1185 = vmax.f32 %v1155, 0.0
        %v1186 = vmax.f32 %v1156, 0.0
        %v1187 = vmax.f32 %v1157, 0.0
        %v1188 = vmax.f32 %v1158, 0.0
        %v1189 = vmax.f32 %v1159, 0.0
        %v1190 = vmax.f32 %v1160, 0.0
        %v1191 = vmax.f32 %v1161, 0.0
        %v1192 = vmax.f32 %v1162, 0.0
        %v1193 = vmax.f32 %v1163, 0.0
        %v1194 = vmax.f32 %v1164, 0.0
        %v1195 = vmax.f32 %v1165, 0.0
        %v1196 = vmax.f32 %v1166, 0.0
        %v1197 = vmax.f32 %v1167, 0.0
        %v1198 = vmin.f32 %v1168, 6.0
        %v1199 = vmin.f32 %v1169, 6.0
        %v1200 = vmin.f32 %v1170, 6.0
        %v1201 = vmin.f32 %v1171, 6.0
        %v1202 = vmin.f32 %v1172, 6.0
        %v1203 = vmin.f32 %v1173, 6.0
        %v1204 = vmin.f32 %v1174, 6.0
        %v1205 = vmin.f32 %v1175, 6.0
        %v1206 = vmin.f32 %v1176, 6.0
        %v1207 = vmin.f32 %v1177, 6.0
        %v1208 = vmin.f32 %v1178, 6.0
        %v1209 = vmin.f32 %v1179, 6.0
        %v1210 = vmin.f32 %v1180, 6.0
        %v1211 = vmin.f32 %v1181, 6.0
        %v1212 = vmin.f32 %v1182, 6.0
        %v1213 = vmin.f32 %v1183, 6.0
        %v1214 = vmin.f32 %v1184, 6.0
        %v1215 = vmin.f32 %v1185, 6.0
        %v1216 = vmin.f32 %v1186, 6.0
        %v1217 = vmin.f32 %v1187, 6.0
        %v1218 = vmin.f32 %v1188, 6.0
        %v1219 = vmin.f32 %v1189, 6.0
        %v1220 = vmin.f32 %v1190, 6.0
        %v1221 = vmin.f32 %v1191, 6.0
        %v1222 = vmin.f32 %v1192, 6.0
        %v1223 = vmin.f32 %v1193, 6.0
        %v1224 = vmin.f32 %v1194, 6.0
        %v1225 = vmin.f32 %v1195, 6.0
        %v1226 = vmin.f32 %v1196, 6.0
        %v1227 = vmin.f32 %v1197, 6.0
        %s1228 = smul.u32 %s27, 8
        %v1229 = vstv %s1228
        %v1230 = vadd.s32 %v1229, 1
        %v1231 = vadd.s32 %v1229, 2
        %v1232 = vadd.s32 %v1229, 3
        %v1233 = vadd.s32 %v1229, 4
        %v1234 = vadd.s32 %v1229, 5
        %v1235 = vadd.s32 %v1229, 6
        %v1236 = vadd.s32 %v1229, 7
        %v1237 = vadd.s32 %v1229, 8
        %v1238 = vadd.s32 %v1229, 9
        %v1239 = vlaneseq
        %v1240 = vshrl.u32 %v1239, 7
        %v1241 = vadd.s32 %v1240, 8
        %v1242 = vadd.s32 %v1240, 16
        %vm1243 = vcmp.ge.s32.totalorder %v1229, 1
        %vm1244 = vcmp.ge.s32.totalorder %v1230, 1
        %vm1245 = vcmp.ge.s32.totalorder %v1231, 1
        %vm1246 = vcmp.ge.s32.totalorder %v1232, 1
        %vm1247 = vcmp.ge.s32.totalorder %v1233, 1
        %vm1248 = vcmp.ge.s32.totalorder %v1234, 1
        %vm1249 = vcmp.ge.s32.totalorder %v1235, 1
        %vm1250 = vcmp.ge.s32.totalorder %v1236, 1
        %vm1251 = vcmp.ge.s32.totalorder %v1237, 1
        %vm1252 = vcmp.ge.s32.totalorder %v1238, 1
        %vm1253 = vcmp.le.s32.totalorder %v1229, 16
        %vm1254 = vcmp.le.s32.totalorder %v1230, 16
        %vm1255 = vcmp.le.s32.totalorder %v1231, 16
        %vm1256 = vcmp.le.s32.totalorder %v1232, 16
        %vm1257 = vcmp.le.s32.totalorder %v1233, 16
        %vm1258 = vcmp.le.s32.totalorder %v1234, 16
        %vm1259 = vcmp.le.s32.totalorder %v1235, 16
        %vm1260 = vcmp.le.s32.totalorder %v1236, 16
        %vm1261 = vcmp.le.s32.totalorder %v1237, 16
        %vm1262 = vcmp.le.s32.totalorder %v1238, 16
        %vm1263 = vmand %vm1243, %vm1253
        %vm1264 = vmand %vm1244, %vm1254
        %vm1265 = vmand %vm1245, %vm1255
        %vm1266 = vmand %vm1246, %vm1256
        %vm1267 = vmand %vm1247, %vm1257
        %vm1268 = vmand %vm1248, %vm1258
        %vm1269 = vmand %vm1249, %vm1259
        %vm1270 = vmand %vm1250, %vm1260
        %vm1271 = vmand %vm1251, %vm1261
        %vm1272 = vmand %vm1252, %vm1262
        %vm1273 = vcmp.ge.s32.totalorder %v1240, 1
        %vm1274 = vcmp.ge.s32.totalorder %v1241, 1
        %vm1275 = vcmp.ge.s32.totalorder %v1242, 1
        %vm1276 = vmand %vm1263, %vm1273
        %vm1277 = vmand %vm1263, %vm1274
        %vm1278 = vmand %vm1263, %vm1275
        %vm1279 = vmand %vm1264, %vm1273
        %vm1280 = vmand %vm1264, %vm1274
        %vm1281 = vmand %vm1264, %vm1275
        %vm1282 = vmand %vm1265, %vm1273
        %vm1283 = vmand %vm1265, %vm1274
        %vm1284 = vmand %vm1265, %vm1275
        %vm1285 = vmand %vm1266, %vm1273
        %vm1286 = vmand %vm1266, %vm1274
        %vm1287 = vmand %vm1266, %vm1275
        %vm1288 = vmand %vm1267, %vm1273
        %vm1289 = vmand %vm1267, %vm1274
        %vm1290 = vmand %vm1267, %vm1275
        %vm1291 = vmand %vm1268, %vm1273
        %vm1292 = vmand %vm1268, %vm1274
        %vm1293 = vmand %vm1268, %vm1275
        %vm1294 = vmand %vm1269, %vm1273
        %vm1295 = vmand %vm1269, %vm1274
        %vm1296 = vmand %vm1269, %vm1275
        %vm1297 = vmand %vm1270, %vm1273
        %vm1298 = vmand %vm1270, %vm1274
        %vm1299 = vmand %vm1270, %vm1275
        %vm1300 = vmand %vm1271, %vm1273
        %vm1301 = vmand %vm1271, %vm1274
        %vm1302 = vmand %vm1271, %vm1275
        %vm1303 = vmand %vm1272, %vm1273
        %vm1304 = vmand %vm1272, %vm1274
        %vm1305 = vmand %vm1272, %vm1275
        %vm1306 = vcmp.le.s32.totalorder %v1240, 16
        %vm1307 = vcmp.le.s32.totalorder %v1241, 16
        %vm1308 = vcmp.le.s32.totalorder %v1242, 16
        %vm1309 = vmand %vm1276, %vm1306
        %vm1310 = vmand %vm1277, %vm1307
        %vm1311 = vmand %vm1278, %vm1308
        %vm1312 = vmand %vm1279, %vm1306
        %vm1313 = vmand %vm1280, %vm1307
        %vm1314 = vmand %vm1281, %vm1308
        %vm1315 = vmand %vm1282, %vm1306
        %vm1316 = vmand %vm1283, %vm1307
        %vm1317 = vmand %vm1284, %vm1308
        %vm1318 = vmand %vm1285, %vm1306
        %vm1319 = vmand %vm1286, %vm1307
        %vm1320 = vmand %vm1287, %vm1308
        %vm1321 = vmand %vm1288, %vm1306
        %vm1322 = vmand %vm1289, %vm1307
        %vm1323 = vmand %vm1290, %vm1308
        %vm1324 = vmand %vm1291, %vm1306
        %vm1325 = vmand %vm1292, %vm1307
        %vm1326 = vmand %vm1293, %vm1308
        %vm1327 = vmand %vm1294, %vm1306
        %vm1328 = vmand %vm1295, %vm1307
        %vm1329 = vmand %vm1296, %vm1308
        %vm1330 = vmand %vm1297, %vm1306
        %vm1331 = vmand %vm1298, %vm1307
        %vm1332 = vmand %vm1299, %vm1308
        %vm1333 = vmand %vm1300, %vm1306
        %vm1334 = vmand %vm1301, %vm1307
        %vm1335 = vmand %vm1302, %vm1308
        %vm1336 = vmand %vm1303, %vm1306
        %vm1337 = vmand %vm1304, %vm1307
        %vm1338 = vmand %vm1305, %vm1308
        %v1339 = vsel %vm1309, 1, 0
        %v1340 = vsel %vm1310, 1, 0
        %v1341 = vsel %vm1311, 1, 0
        %v1342 = vsel %vm1312, 1, 0
        %v1343 = vsel %vm1313, 1, 0
        %v1344 = vsel %vm1314, 1, 0
        %v1345 = vsel %vm1315, 1, 0
        %v1346 = vsel %vm1316, 1, 0
        %v1347 = vsel %vm1317, 1, 0
        %v1348 = vsel %vm1318, 1, 0
        %v1349 = vsel %vm1319, 1, 0
        %v1350 = vsel %vm1320, 1, 0
        %v1351 = vsel %vm1321, 1, 0
        %v1352 = vsel %vm1322, 1, 0
        %v1353 = vsel %vm1323, 1, 0
        %v1354 = vsel %vm1324, 1, 0
        %v1355 = vsel %vm1325, 1, 0
        %v1356 = vsel %vm1326, 1, 0
        %v1357 = vsel %vm1327, 1, 0
        %v1358 = vsel %vm1328, 1, 0
        %v1359 = vsel %vm1329, 1, 0
        %v1360 = vsel %vm1330, 1, 0
        %v1361 = vsel %vm1331, 1, 0
        %v1362 = vsel %vm1332, 1, 0
        %v1363 = vsel %vm1333, 1, 0
        %v1364 = vsel %vm1334, 1, 0
        %v1365 = vsel %vm1335, 1, 0
        %v1366 = vsel %vm1336, 1, 0
        %v1367 = vsel %vm1337, 1, 0
        %v1368 = vsel %vm1338, 1, 0
        %vm1369 = vcmp.eq.s32.totalorder %v1339, 1
        %vm1370 = vcmp.eq.s32.totalorder %v1340, 1
        %vm1371 = vcmp.eq.s32.totalorder %v1341, 1
        %vm1372 = vcmp.eq.s32.totalorder %v1342, 1
        %vm1373 = vcmp.eq.s32.totalorder %v1343, 1
        %vm1374 = vcmp.eq.s32.totalorder %v1344, 1
        %vm1375 = vcmp.eq.s32.totalorder %v1345, 1
        %vm1376 = vcmp.eq.s32.totalorder %v1346, 1
        %vm1377 = vcmp.eq.s32.totalorder %v1347, 1
        %vm1378 = vcmp.eq.s32.totalorder %v1348, 1
        %vm1379 = vcmp.eq.s32.totalorder %v1349, 1
        %vm1380 = vcmp.eq.s32.totalorder %v1350, 1
        %vm1381 = vcmp.eq.s32.totalorder %v1351, 1
        %vm1382 = vcmp.eq.s32.totalorder %v1352, 1
        %vm1383 = vcmp.eq.s32.totalorder %v1353, 1
        %vm1384 = vcmp.eq.s32.totalorder %v1354, 1
        %vm1385 = vcmp.eq.s32.totalorder %v1355, 1
        %vm1386 = vcmp.eq.s32.totalorder %v1356, 1
        %vm1387 = vcmp.eq.s32.totalorder %v1357, 1
        %vm1388 = vcmp.eq.s32.totalorder %v1358, 1
        %vm1389 = vcmp.eq.s32.totalorder %v1359, 1
        %vm1390 = vcmp.eq.s32.totalorder %v1360, 1
        %vm1391 = vcmp.eq.s32.totalorder %v1361, 1
        %vm1392 = vcmp.eq.s32.totalorder %v1362, 1
        %vm1393 = vcmp.eq.s32.totalorder %v1363, 1
        %vm1394 = vcmp.eq.s32.totalorder %v1364, 1
        %vm1395 = vcmp.eq.s32.totalorder %v1365, 1
        %vm1396 = vcmp.eq.s32.totalorder %v1366, 1
        %vm1397 = vcmp.eq.s32.totalorder %v1367, 1
        %vm1398 = vcmp.eq.s32.totalorder %v1368, 1
        %v1399 = vsel %vm1369, %v1198, 0.0
        %v1400 = vsel %vm1370, %v1199, 0.0
        %v1401 = vsel %vm1371, %v1200, 0.0
        %v1402 = vsel %vm1372, %v1201, 0.0
        %v1403 = vsel %vm1373, %v1202, 0.0
        %v1404 = vsel %vm1374, %v1203, 0.0
        %v1405 = vsel %vm1375, %v1204, 0.0
        %v1406 = vsel %vm1376, %v1205, 0.0
        %v1407 = vsel %vm1377, %v1206, 0.0
        %v1408 = vsel %vm1378, %v1207, 0.0
        %v1409 = vsel %vm1379, %v1208, 0.0
        %v1410 = vsel %vm1380, %v1209, 0.0
        %v1411 = vsel %vm1381, %v1210, 0.0
        %v1412 = vsel %vm1382, %v1211, 0.0
        %v1413 = vsel %vm1383, %v1212, 0.0
        %v1414 = vsel %vm1384, %v1213, 0.0
        %v1415 = vsel %vm1385, %v1214, 0.0
        %v1416 = vsel %vm1386, %v1215, 0.0
        %v1417 = vsel %vm1387, %v1216, 0.0
        %v1418 = vsel %vm1388, %v1217, 0.0
        %v1419 = vsel %vm1389, %v1218, 0.0
        %v1420 = vsel %vm1390, %v1219, 0.0
        %v1421 = vsel %vm1391, %v1220, 0.0
        %v1422 = vsel %vm1392, %v1221, 0.0
        %v1423 = vsel %vm1393, %v1222, 0.0
        %v1424 = vsel %vm1394, %v1223, 0.0
        %v1425 = vsel %vm1395, %v1224, 0.0
        %v1426 = vsel %vm1396, %v1225, 0.0
        %v1427 = vsel %vm1397, %v1226, 0.0
        %v1428 = vsel %vm1398, %v1227, 0.0
        %v1429 = vld [vmem:[%s3] sm:$0x7]
        %v1430 = vld [vmem:[%s3 + $0x4] sm:$0x7]
        %v1431 = vld [vmem:[%s3 + $0x8] sm:$0x7]
        %v1432 = vlaneseq
        %v1433 = vshrl.u32 %v1432, 7
        %v1434 = vsub.s32 0, %v1433
        %v1435 = vrot.slane %v1429, %v1434
        %v1436 = vmul.f32 %v1399, %v1435
        %v1437 = vmul.f32 %v1400, %v1435
        %v1438 = vmul.f32 %v1402, %v1435
        %v1439 = vmul.f32 %v1403, %v1435
        %v1440 = vmul.f32 %v1405, %v1435
        %v1441 = vmul.f32 %v1406, %v1435
        %v1442 = vmul.f32 %v1408, %v1435
        %v1443 = vmul.f32 %v1409, %v1435
        %v1444 = vmul.f32 %v1411, %v1435
        %v1445 = vmul.f32 %v1412, %v1435
        %v1446 = vmul.f32 %v1414, %v1435
        %v1447 = vmul.f32 %v1415, %v1435
        %v1448 = vmul.f32 %v1417, %v1435
        %v1449 = vmul.f32 %v1418, %v1435
        %v1450 = vmul.f32 %v1420, %v1435
        %v1451 = vmul.f32 %v1421, %v1435
        %v1452 = vadd.f32 %v1436, 0.0
        %v1453 = vadd.f32 %v1437, 0.0
        %v1454 = vadd.f32 %v1438, 0.0
        %v1455 = vadd.f32 %v1439, 0.0
        %v1456 = vadd.f32 %v1440, 0.0
        %v1457 = vadd.f32 %v1441, 0.0
        %v1458 = vadd.f32 %v1442, 0.0
        %v1459 = vadd.f32 %v1443, 0.0
        %v1460 = vadd.f32 %v1444, 0.0
        %v1461 = vadd.f32 %v1445, 0.0
        %v1462 = vadd.f32 %v1446, 0.0
        %v1463 = vadd.f32 %v1447, 0.0
        %v1464 = vadd.f32 %v1448, 0.0
        %v1465 = vadd.f32 %v1449, 0.0
        %v1466 = vadd.f32 %v1450, 0.0
        %v1467 = vadd.f32 %v1451, 0.0
        %v1468 = vlaneseq
        %v1469 = vshrl.u32 %v1468, 7
        %v1470 = vsub.s32 0, %v1469
        %v1471 = vrot.slane %v1430, %v1470
        %v1472 = vmul.f32 %v1402, %v1471
        %v1473 = vmul.f32 %v1403, %v1471
        %v1474 = vmul.f32 %v1405, %v1471
        %v1475 = vmul.f32 %v1406, %v1471
        %v1476 = vmul.f32 %v1408, %v1471
        %v1477 = vmul.f32 %v1409, %v1471
        %v1478 = vmul.f32 %v1411, %v1471
        %v1479 = vmul.f32 %v1412, %v1471
        %v1480 = vmul.f32 %v1414, %v1471
        %v1481 = vmul.f32 %v1415, %v1471
        %v1482 = vmul.f32 %v1417, %v1471
        %v1483 = vmul.f32 %v1418, %v1471
        %v1484 = vmul.f32 %v1420, %v1471
        %v1485 = vmul.f32 %v1421, %v1471
        %v1486 = vmul.f32 %v1423, %v1471
        %v1487 = vmul.f32 %v1424, %v1471
        %v1488 = vadd.f32 %v1452, %v1472
        %v1489 = vadd.f32 %v1453, %v1473
        %v1490 = vadd.f32 %v1454, %v1474
        %v1491 = vadd.f32 %v1455, %v1475
        %v1492 = vadd.f32 %v1456, %v1476
        %v1493 = vadd.f32 %v1457, %v1477
        %v1494 = vadd.f32 %v1458, %v1478
        %v1495 = vadd.f32 %v1459, %v1479
        %v1496 = vadd.f32 %v1460, %v1480
        %v1497 = vadd.f32 %v1461, %v1481
        %v1498 = vadd.f32 %v1462, %v1482
        %v1499 = vadd.f32 %v1463, %v1483
        %v1500 = vadd.f32 %v1464, %v1484
        %v1501 = vadd.f32 %v1465, %v1485
        %v1502 = vadd.f32 %v1466, %v1486
        %v1503 = vadd.f32 %v1467, %v1487
        %v1504 = vlaneseq
        %v1505 = vshrl.u32 %v1504, 7
        %v1506 = vsub.s32 0, %v1505
        %v1507 = vrot.slane %v1431, %v1506
        %v1508 = vmul.f32 %v1405, %v1507
        %v1509 = vmul.f32 %v1406, %v1507
        %v1510 = vmul.f32 %v1408, %v1507
        %v1511 = vmul.f32 %v1409, %v1507
        %v1512 = vmul.f32 %v1411, %v1507
        %v1513 = vmul.f32 %v1412, %v1507
        %v1514 = vmul.f32 %v1414, %v1507
        %v1515 = vmul.f32 %v1415, %v1507
        %v1516 = vmul.f32 %v1417, %v1507
        %v1517 = vmul.f32 %v1418, %v1507
        %v1518 = vmul.f32 %v1420, %v1507
        %v1519 = vmul.f32 %v1421, %v1507
        %v1520 = vmul.f32 %v1423, %v1507
        %v1521 = vmul.f32 %v1424, %v1507
        %v1522 = vmul.f32 %v1426, %v1507
        %v1523 = vmul.f32 %v1427, %v1507
        %v1524 = vadd.f32 %v1488, %v1508
        %v1525 = vadd.f32 %v1489, %v1509
        %v1526 = vadd.f32 %v1490, %v1510
        %v1527 = vadd.f32 %v1491, %v1511
        %v1528 = vadd.f32 %v1492, %v1512
        %v1529 = vadd.f32 %v1493, %v1513
        %v1530 = vadd.f32 %v1494, %v1514
        %v1531 = vadd.f32 %v1495, %v1515
        %v1532 = vadd.f32 %v1496, %v1516
        %v1533 = vadd.f32 %v1497, %v1517
        %v1534 = vadd.f32 %v1498, %v1518
        %v1535 = vadd.f32 %v1499, %v1519
        %v1536 = vadd.f32 %v1500, %v1520
        %v1537 = vadd.f32 %v1501, %v1521
        %v1538 = vadd.f32 %v1502, %v1522
        %v1539 = vadd.f32 %v1503, %v1523
        %v1540 = vlaneseq
        %v1541 = vshrl.u32 %v1540, 7
        %v1542 = vsub.s32 1, %v1541
        %v1543 = vrot.slane %v1429, %v1542
        %v1544 = vmul.f32 %v1399, %v1543
        %v1545 = vmul.f32 %v1400, %v1543
        %v1546 = vmul.f32 %v1401, %v1543
        %v1547 = vmul.f32 %v1402, %v1543
        %v1548 = vmul.f32 %v1403, %v1543
        %v1549 = vmul.f32 %v1404, %v1543
        %v1550 = vmul.f32 %v1405, %v1543
        %v1551 = vmul.f32 %v1406, %v1543
        %v1552 = vmul.f32 %v1407, %v1543
        %v1553 = vmul.f32 %v1408, %v1543
        %v1554 = vmul.f32 %v1409, %v1543
        %v1555 = vmul.f32 %v1410, %v1543
        %v1556 = vmul.f32 %v1411, %v1543
        %v1557 = vmul.f32 %v1412, %v1543
        %v1558 = vmul.f32 %v1413, %v1543
        %v1559 = vmul.f32 %v1414, %v1543
        %v1560 = vmul.f32 %v1415, %v1543
        %v1561 = vmul.f32 %v1416, %v1543
        %v1562 = vmul.f32 %v1417, %v1543
        %v1563 = vmul.f32 %v1418, %v1543
        %v1564 = vmul.f32 %v1419, %v1543
        %v1565 = vmul.f32 %v1420, %v1543
        %v1566 = vmul.f32 %v1421, %v1543
        %v1567 = vmul.f32 %v1422, %v1543
        %vm1592 = vcmask 1046528
        %v1593 = vrot.slane %v1544, 1
        %v1594 = vrot.slane %v1545, 1
        %v1595 = vsel %vm1592, %v1593, %v1594
        %v1596 = vrot.slane %v1546, 1
        %v1597 = vsel %vm1592, %v1594, %v1596
        %v1598 = vrot.slane %v1547, 1
        %v1599 = vrot.slane %v1548, 1
        %v1600 = vsel %vm1592, %v1598, %v1599
        %v1601 = vrot.slane %v1549, 1
        %v1602 = vsel %vm1592, %v1599, %v1601
        %v1603 = vrot.slane %v1550, 1
        %v1604 = vrot.slane %v1551, 1
        %v1605 = vsel %vm1592, %v1603, %v1604
        %v1606 = vrot.slane %v1552, 1
        %v1607 = vsel %vm1592, %v1604, %v1606
        %v1608 = vrot.slane %v1553, 1
        %v1609 = vrot.slane %v1554, 1
        %v1610 = vsel %vm1592, %v1608, %v1609
        %v1611 = vrot.slane %v1555, 1
        %v1612 = vsel %vm1592, %v1609, %v1611
        %v1613 = vrot.slane %v1556, 1
        %v1614 = vrot.slane %v1557, 1
        %v1615 = vsel %vm1592, %v1613, %v1614
        %v1616 = vrot.slane %v1558, 1
        %v1617 = vsel %vm1592, %v1614, %v1616
        %v1618 = vrot.slane %v1559, 1
        %v1619 = vrot.slane %v1560, 1
        %v1620 = vsel %vm1592, %v1618, %v1619
        %v1621 = vrot.slane %v1561, 1
        %v1622 = vsel %vm1592, %v1619, %v1621
        %v1623 = vrot.slane %v1562, 1
        %v1624 = vrot.slane %v1563, 1
        %v1625 = vsel %vm1592, %v1623, %v1624
        %v1626 = vrot.slane %v1564, 1
        %v1627 = vsel %vm1592, %v1624, %v1626
        %v1628 = vrot.slane %v1565, 1
        %v1629 = vrot.slane %v1566, 1
        %v1630 = vsel %vm1592, %v1628, %v1629
        %v1631 = vrot.slane %v1567, 1
        %v1632 = vsel %vm1592, %v1629, %v1631
        %v1649 = vadd.f32 %v1524, %v1595
        %v1650 = vadd.f32 %v1525, %v1597
        %v1651 = vadd.f32 %v1526, %v1600
        %v1652 = vadd.f32 %v1527, %v1602
        %v1653 = vadd.f32 %v1528, %v1605
        %v1654 = vadd.f32 %v1529, %v1607
        %v1655 = vadd.f32 %v1530, %v1610
        %v1656 = vadd.f32 %v1531, %v1612
        %v1657 = vadd.f32 %v1532, %v1615
        %v1658 = vadd.f32 %v1533, %v1617
        %v1659 = vadd.f32 %v1534, %v1620
        %v1660 = vadd.f32 %v1535, %v1622
        %v1661 = vadd.f32 %v1536, %v1625
        %v1662 = vadd.f32 %v1537, %v1627
        %v1663 = vadd.f32 %v1538, %v1630
        %v1664 = vadd.f32 %v1539, %v1632
        %v1665 = vlaneseq
        %v1666 = vshrl.u32 %v1665, 7
        %v1667 = vsub.s32 1, %v1666
        %v1668 = vrot.slane %v1430, %v1667
        %v1669 = vmul.f32 %v1402, %v1668
        %v1670 = vmul.f32 %v1403, %v1668
        %v1671 = vmul.f32 %v1404, %v1668
        %v1672 = vmul.f32 %v1405, %v1668
        %v1673 = vmul.f32 %v1406, %v1668
        %v1674 = vmul.f32 %v1407, %v1668
        %v1675 = vmul.f32 %v1408, %v1668
        %v1676 = vmul.f32 %v1409, %v1668
        %v1677 = vmul.f32 %v1410, %v1668
        %v1678 = vmul.f32 %v1411, %v1668
        %v1679 = vmul.f32 %v1412, %v1668
        %v1680 = vmul.f32 %v1413, %v1668
        %v1681 = vmul.f32 %v1414, %v1668
        %v1682 = vmul.f32 %v1415, %v1668
        %v1683 = vmul.f32 %v1416, %v1668
        %v1684 = vmul.f32 %v1417, %v1668
        %v1685 = vmul.f32 %v1418, %v1668
        %v1686 = vmul.f32 %v1419, %v1668
        %v1687 = vmul.f32 %v1420, %v1668
        %v1688 = vmul.f32 %v1421, %v1668
        %v1689 = vmul.f32 %v1422, %v1668
        %v1690 = vmul.f32 %v1423, %v1668
        %v1691 = vmul.f32 %v1424, %v1668
        %v1692 = vmul.f32 %v1425, %v1668
        %v1717 = vrot.slane %v1669, 1
        %v1718 = vrot.slane %v1670, 1
        %v1719 = vsel %vm1592, %v1717, %v1718
        %v1720 = vrot.slane %v1671, 1
        %v1721 = vsel %vm1592, %v1718, %v1720
        %v1722 = vrot.slane %v1672, 1
        %v1723 = vrot.slane %v1673, 1
        %v1724 = vsel %vm1592, %v1722, %v1723
        %v1725 = vrot.slane %v1674, 1
        %v1726 = vsel %vm1592, %v1723, %v1725
        %v1727 = vrot.slane %v1675, 1
        %v1728 = vrot.slane %v1676, 1
        %v1729 = vsel %vm1592, %v1727, %v1728
        %v1730 = vrot.slane %v1677, 1
        %v1731 = vsel %vm1592, %v1728, %v1730
        %v1732 = vrot.slane %v1678, 1
        %v1733 = vrot.slane %v1679, 1
        %v1734 = vsel %vm1592, %v1732, %v1733
        %v1735 = vrot.slane %v1680, 1
        %v1736 = vsel %vm1592, %v1733, %v1735
        %v1737 = vrot.slane %v1681, 1
        %v1738 = vrot.slane %v1682, 1
        %v1739 = vsel %vm1592, %v1737, %v1738
        %v1740 = vrot.slane %v1683, 1
        %v1741 = vsel %vm1592, %v1738, %v1740
        %v1742 = vrot.slane %v1684, 1
        %v1743 = vrot.slane %v1685, 1
        %v1744 = vsel %vm1592, %v1742, %v1743
        %v1745 = vrot.slane %v1686, 1
        %v1746 = vsel %vm1592, %v1743, %v1745
        %v1747 = vrot.slane %v1687, 1
        %v1748 = vrot.slane %v1688, 1
        %v1749 = vsel %vm1592, %v1747, %v1748
        %v1750 = vrot.slane %v1689, 1
        %v1751 = vsel %vm1592, %v1748, %v1750
        %v1752 = vrot.slane %v1690, 1
        %v1753 = vrot.slane %v1691, 1
        %v1754 = vsel %vm1592, %v1752, %v1753
        %v1755 = vrot.slane %v1692, 1
        %v1756 = vsel %vm1592, %v1753, %v1755
        %v1773 = vadd.f32 %v1649, %v1719
        %v1774 = vadd.f32 %v1650, %v1721
        %v1775 = vadd.f32 %v1651, %v1724
        %v1776 = vadd.f32 %v1652, %v1726
        %v1777 = vadd.f32 %v1653, %v1729
        %v1778 = vadd.f32 %v1654, %v1731
        %v1779 = vadd.f32 %v1655, %v1734
        %v1780 = vadd.f32 %v1656, %v1736
        %v1781 = vadd.f32 %v1657, %v1739
        %v1782 = vadd.f32 %v1658, %v1741
        %v1783 = vadd.f32 %v1659, %v1744
        %v1784 = vadd.f32 %v1660, %v1746
        %v1785 = vadd.f32 %v1661, %v1749
        %v1786 = vadd.f32 %v1662, %v1751
        %v1787 = vadd.f32 %v1663, %v1754
        %v1788 = vadd.f32 %v1664, %v1756
        %v1789 = vlaneseq
        %v1790 = vshrl.u32 %v1789, 7
        %v1791 = vsub.s32 1, %v1790
        %v1792 = vrot.slane %v1431, %v1791
        %v1793 = vmul.f32 %v1405, %v1792
        %v1794 = vmul.f32 %v1406, %v1792
        %v1795 = vmul.f32 %v1407, %v1792
        %v1796 = vmul.f32 %v1408, %v1792
        %v1797 = vmul.f32 %v1409, %v1792
        %v1798 = vmul.f32 %v1410, %v1792
        %v1799 = vmul.f32 %v1411, %v1792
        %v1800 = vmul.f32 %v1412, %v1792
        %v1801 = vmul.f32 %v1413, %v1792
        %v1802 = vmul.f32 %v1414, %v1792
        %v1803 = vmul.f32 %v1415, %v1792
        %v1804 = vmul.f32 %v1416, %v1792
        %v1805 = vmul.f32 %v1417, %v1792
        %v1806 = vmul.f32 %v1418, %v1792
        %v1807 = vmul.f32 %v1419, %v1792
        %v1808 = vmul.f32 %v1420, %v1792
        %v1809 = vmul.f32 %v1421, %v1792
        %v1810 = vmul.f32 %v1422, %v1792
        %v1811 = vmul.f32 %v1423, %v1792
        %v1812 = vmul.f32 %v1424, %v1792
        %v1813 = vmul.f32 %v1425, %v1792
        %v1814 = vmul.f32 %v1426, %v1792
        %v1815 = vmul.f32 %v1427, %v1792
        %v1816 = vmul.f32 %v1428, %v1792
        %v1841 = vrot.slane %v1793, 1
        %v1842 = vrot.slane %v1794, 1
        %v1843 = vsel %vm1592, %v1841, %v1842
        %v1844 = vrot.slane %v1795, 1
        %v1845 = vsel %vm1592, %v1842, %v1844
        %v1846 = vrot.slane %v1796, 1
        %v1847 = vrot.slane %v1797, 1
        %v1848 = vsel %vm1592, %v1846, %v1847
        %v1849 = vrot.slane %v1798, 1
        %v1850 = vsel %vm1592, %v1847, %v1849
        %v1851 = vrot.slane %v1799, 1
        %v1852 = vrot.slane %v1800, 1
        %v1853 = vsel %vm1592, %v1851, %v1852
        %v1854 = vrot.slane %v1801, 1
        %v1855 = vsel %vm1592, %v1852, %v1854
        %v1856 = vrot.slane %v1802, 1
        %v1857 = vrot.slane %v1803, 1
        %v1858 = vsel %vm1592, %v1856, %v1857
        %v1859 = vrot.slane %v1804, 1
        %v1860 = vsel %vm1592, %v1857, %v1859
        %v1861 = vrot.slane %v1805, 1
        %v1862 = vrot.slane %v1806, 1
        %v1863 = vsel %vm1592, %v1861, %v1862
        %v1864 = vrot.slane %v1807, 1
        %v1865 = vsel %vm1592, %v1862, %v1864
        %v1866 = vrot.slane %v1808, 1
        %v1867 = vrot.slane %v1809, 1
        %v1868 = vsel %vm1592, %v1866, %v1867
        %v1869 = vrot.slane %v1810, 1
        %v1870 = vsel %vm1592, %v1867, %v1869
        %v1871 = vrot.slane %v1811, 1
        %v1872 = vrot.slane %v1812, 1
        %v1873 = vsel %vm1592, %v1871, %v1872
        %v1874 = vrot.slane %v1813, 1
        %v1875 = vsel %vm1592, %v1872, %v1874
        %v1876 = vrot.slane %v1814, 1
        %v1877 = vrot.slane %v1815, 1
        %v1878 = vsel %vm1592, %v1876, %v1877
        %v1879 = vrot.slane %v1816, 1
        %v1880 = vsel %vm1592, %v1877, %v1879
        %v1897 = vadd.f32 %v1773, %v1843
        %v1898 = vadd.f32 %v1774, %v1845
        %v1899 = vadd.f32 %v1775, %v1848
        %v1900 = vadd.f32 %v1776, %v1850
        %v1901 = vadd.f32 %v1777, %v1853
        %v1902 = vadd.f32 %v1778, %v1855
        %v1903 = vadd.f32 %v1779, %v1858
        %v1904 = vadd.f32 %v1780, %v1860
        %v1905 = vadd.f32 %v1781, %v1863
        %v1906 = vadd.f32 %v1782, %v1865
        %v1907 = vadd.f32 %v1783, %v1868
        %v1908 = vadd.f32 %v1784, %v1870
        %v1909 = vadd.f32 %v1785, %v1873
        %v1910 = vadd.f32 %v1786, %v1875
        %v1911 = vadd.f32 %v1787, %v1878
        %v1912 = vadd.f32 %v1788, %v1880
        %v1913 = vlaneseq
        %v1914 = vshrl.u32 %v1913, 7
        %v1915 = vsub.s32 2, %v1914
        %v1916 = vrot.slane %v1429, %v1915
        %v1917 = vmul.f32 %v1399, %v1916
        %v1918 = vmul.f32 %v1400, %v1916
        %v1919 = vmul.f32 %v1401, %v1916
        %v1920 = vmul.f32 %v1402, %v1916
        %v1921 = vmul.f32 %v1403, %v1916
        %v1922 = vmul.f32 %v1404, %v1916
        %v1923 = vmul.f32 %v1405, %v1916
        %v1924 = vmul.f32 %v1406, %v1916
        %v1925 = vmul.f32 %v1407, %v1916
        %v1926 = vmul.f32 %v1408, %v1916
        %v1927 = vmul.f32 %v1409, %v1916
        %v1928 = vmul.f32 %v1410, %v1916
        %v1929 = vmul.f32 %v1411, %v1916
        %v1930 = vmul.f32 %v1412, %v1916
        %v1931 = vmul.f32 %v1413, %v1916
        %v1932 = vmul.f32 %v1414, %v1916
        %v1933 = vmul.f32 %v1415, %v1916
        %v1934 = vmul.f32 %v1416, %v1916
        %v1935 = vmul.f32 %v1417, %v1916
        %v1936 = vmul.f32 %v1418, %v1916
        %v1937 = vmul.f32 %v1419, %v1916
        %v1938 = vmul.f32 %v1420, %v1916
        %v1939 = vmul.f32 %v1421, %v1916
        %v1940 = vmul.f32 %v1422, %v1916
        %vm1965 = vcmask 1045504
        %v1966 = vrot.slane %v1917, 2
        %v1967 = vrot.slane %v1918, 2
        %v1968 = vsel %vm1965, %v1966, %v1967
        %v1969 = vrot.slane %v1919, 2
        %v1970 = vsel %vm1965, %v1967, %v1969
        %v1971 = vrot.slane %v1920, 2
        %v1972 = vrot.slane %v1921, 2
        %v1973 = vsel %vm1965, %v1971, %v1972
        %v1974 = vrot.slane %v1922, 2
        %v1975 = vsel %vm1965, %v1972, %v1974
        %v1976 = vrot.slane %v1923, 2
        %v1977 = vrot.slane %v1924, 2
        %v1978 = vsel %vm1965, %v1976, %v1977
        %v1979 = vrot.slane %v1925, 2
        %v1980 = vsel %vm1965, %v1977, %v1979
        %v1981 = vrot.slane %v1926, 2
        %v1982 = vrot.slane %v1927, 2
        %v1983 = vsel %vm1965, %v1981, %v1982
        %v1984 = vrot.slane %v1928, 2
        %v1985 = vsel %vm1965, %v1982, %v1984
        %v1986 = vrot.slane %v1929, 2
        %v1987 = vrot.slane %v1930, 2
        %v1988 = vsel %vm1965, %v1986, %v1987
        %v1989 = vrot.slane %v1931, 2
        %v1990 = vsel %vm1965, %v1987, %v1989
        %v1991 = vrot.slane %v1932, 2
        %v1992 = vrot.slane %v1933, 2
        %v1993 = vsel %vm1965, %v1991, %v1992
        %v1994 = vrot.slane %v1934, 2
        %v1995 = vsel %vm1965, %v1992, %v1994
        %v1996 = vrot.slane %v1935, 2
        %v1997 = vrot.slane %v1936, 2
        %v1998 = vsel %vm1965, %v1996, %v1997
        %v1999 = vrot.slane %v1937, 2
        %v2000 = vsel %vm1965, %v1997, %v1999
        %v2001 = vrot.slane %v1938, 2
        %v2002 = vrot.slane %v1939, 2
        %v2003 = vsel %vm1965, %v2001, %v2002
        %v2004 = vrot.slane %v1940, 2
        %v2005 = vsel %vm1965, %v2002, %v2004
        %v2022 = vadd.f32 %v1897, %v1968
        %v2023 = vadd.f32 %v1898, %v1970
        %v2024 = vadd.f32 %v1899, %v1973
        %v2025 = vadd.f32 %v1900, %v1975
        %v2026 = vadd.f32 %v1901, %v1978
        %v2027 = vadd.f32 %v1902, %v1980
        %v2028 = vadd.f32 %v1903, %v1983
        %v2029 = vadd.f32 %v1904, %v1985
        %v2030 = vadd.f32 %v1905, %v1988
        %v2031 = vadd.f32 %v1906, %v1990
        %v2032 = vadd.f32 %v1907, %v1993
        %v2033 = vadd.f32 %v1908, %v1995
        %v2034 = vadd.f32 %v1909, %v1998
        %v2035 = vadd.f32 %v1910, %v2000
        %v2036 = vadd.f32 %v1911, %v2003
        %v2037 = vadd.f32 %v1912, %v2005
        %v2038 = vlaneseq
        %v2039 = vshrl.u32 %v2038, 7
        %v2040 = vsub.s32 2, %v2039
        %v2041 = vrot.slane %v1430, %v2040
        %v2042 = vmul.f32 %v1402, %v2041
        %v2043 = vmul.f32 %v1403, %v2041
        %v2044 = vmul.f32 %v1404, %v2041
        %v2045 = vmul.f32 %v1405, %v2041
        %v2046 = vmul.f32 %v1406, %v2041
        %v2047 = vmul.f32 %v1407, %v2041
        %v2048 = vmul.f32 %v1408, %v2041
        %v2049 = vmul.f32 %v1409, %v2041
        %v2050 = vmul.f32 %v1410, %v2041
        %v2051 = vmul.f32 %v1411, %v2041
        %v2052 = vmul.f32 %v1412, %v2041
        %v2053 = vmul.f32 %v1413, %v2041
        %v2054 = vmul.f32 %v1414, %v2041
        %v2055 = vmul.f32 %v1415, %v2041
        %v2056 = vmul.f32 %v1416, %v2041
        %v2057 = vmul.f32 %v1417, %v2041
        %v2058 = vmul.f32 %v1418, %v2041
        %v2059 = vmul.f32 %v1419, %v2041
        %v2060 = vmul.f32 %v1420, %v2041
        %v2061 = vmul.f32 %v1421, %v2041
        %v2062 = vmul.f32 %v1422, %v2041
        %v2063 = vmul.f32 %v1423, %v2041
        %v2064 = vmul.f32 %v1424, %v2041
        %v2065 = vmul.f32 %v1425, %v2041
        %v2090 = vrot.slane %v2042, 2
        %v2091 = vrot.slane %v2043, 2
        %v2092 = vsel %vm1965, %v2090, %v2091
        %v2093 = vrot.slane %v2044, 2
        %v2094 = vsel %vm1965, %v2091, %v2093
        %v2095 = vrot.slane %v2045, 2
        %v2096 = vrot.slane %v2046, 2
        %v2097 = vsel %vm1965, %v2095, %v2096
        %v2098 = vrot.slane %v2047, 2
        %v2099 = vsel %vm1965, %v2096, %v2098
        %v2100 = vrot.slane %v2048, 2
        %v2101 = vrot.slane %v2049, 2
        %v2102 = vsel %vm1965, %v2100, %v2101
        %v2103 = vrot.slane %v2050, 2
        %v2104 = vsel %vm1965, %v2101, %v2103
        %v2105 = vrot.slane %v2051, 2
        %v2106 = vrot.slane %v2052, 2
        %v2107 = vsel %vm1965, %v2105, %v2106
        %v2108 = vrot.slane %v2053, 2
        %v2109 = vsel %vm1965, %v2106, %v2108
        %v2110 = vrot.slane %v2054, 2
        %v2111 = vrot.slane %v2055, 2
        %v2112 = vsel %vm1965, %v2110, %v2111
        %v2113 = vrot.slane %v2056, 2
        %v2114 = vsel %vm1965, %v2111, %v2113
        %v2115 = vrot.slane %v2057, 2
        %v2116 = vrot.slane %v2058, 2
        %v2117 = vsel %vm1965, %v2115, %v2116
        %v2118 = vrot.slane %v2059, 2
        %v2119 = vsel %vm1965, %v2116, %v2118
        %v2120 = vrot.slane %v2060, 2
        %v2121 = vrot.slane %v2061, 2
        %v2122 = vsel %vm1965, %v2120, %v2121
        %v2123 = vrot.slane %v2062, 2
        %v2124 = vsel %vm1965, %v2121, %v2123
        %v2125 = vrot.slane %v2063, 2
        %v2126 = vrot.slane %v2064, 2
        %v2127 = vsel %vm1965, %v2125, %v2126
        %v2128 = vrot.slane %v2065, 2
        %v2129 = vsel %vm1965, %v2126, %v2128
        %v2146 = vadd.f32 %v2022, %v2092
        %v2147 = vadd.f32 %v2023, %v2094
        %v2148 = vadd.f32 %v2024, %v2097
        %v2149 = vadd.f32 %v2025, %v2099
        %v2150 = vadd.f32 %v2026, %v2102
        %v2151 = vadd.f32 %v2027, %v2104
        %v2152 = vadd.f32 %v2028, %v2107
        %v2153 = vadd.f32 %v2029, %v2109
        %v2154 = vadd.f32 %v2030, %v2112
        %v2155 = vadd.f32 %v2031, %v2114
        %v2156 = vadd.f32 %v2032, %v2117
        %v2157 = vadd.f32 %v2033, %v2119
        %v2158 = vadd.f32 %v2034, %v2122
        %v2159 = vadd.f32 %v2035, %v2124
        %v2160 = vadd.f32 %v2036, %v2127
        %v2161 = vadd.f32 %v2037, %v2129
        %v2162 = vlaneseq
        %v2163 = vshrl.u32 %v2162, 7
        %v2164 = vsub.s32 2, %v2163
        %v2165 = vrot.slane %v1431, %v2164
        %v2166 = vmul.f32 %v1405, %v2165
        %v2167 = vmul.f32 %v1406, %v2165
        %v2168 = vmul.f32 %v1407, %v2165
        %v2169 = vmul.f32 %v1408, %v2165
        %v2170 = vmul.f32 %v1409, %v2165
        %v2171 = vmul.f32 %v1410, %v2165
        %v2172 = vmul.f32 %v1411, %v2165
        %v2173 = vmul.f32 %v1412, %v2165
        %v2174 = vmul.f32 %v1413, %v2165
        %v2175 = vmul.f32 %v1414, %v2165
        %v2176 = vmul.f32 %v1415, %v2165
        %v2177 = vmul.f32 %v1416, %v2165
        %v2178 = vmul.f32 %v1417, %v2165
        %v2179 = vmul.f32 %v1418, %v2165
        %v2180 = vmul.f32 %v1419, %v2165
        %v2181 = vmul.f32 %v1420, %v2165
        %v2182 = vmul.f32 %v1421, %v2165
        %v2183 = vmul.f32 %v1422, %v2165
        %v2184 = vmul.f32 %v1423, %v2165
        %v2185 = vmul.f32 %v1424, %v2165
        %v2186 = vmul.f32 %v1425, %v2165
        %v2187 = vmul.f32 %v1426, %v2165
        %v2188 = vmul.f32 %v1427, %v2165
        %v2189 = vmul.f32 %v1428, %v2165
        %v2214 = vrot.slane %v2166, 2
        %v2215 = vrot.slane %v2167, 2
        %v2216 = vsel %vm1965, %v2214, %v2215
        %v2217 = vrot.slane %v2168, 2
        %v2218 = vsel %vm1965, %v2215, %v2217
        %v2219 = vrot.slane %v2169, 2
        %v2220 = vrot.slane %v2170, 2
        %v2221 = vsel %vm1965, %v2219, %v2220
        %v2222 = vrot.slane %v2171, 2
        %v2223 = vsel %vm1965, %v2220, %v2222
        %v2224 = vrot.slane %v2172, 2
        %v2225 = vrot.slane %v2173, 2
        %v2226 = vsel %vm1965, %v2224, %v2225
        %v2227 = vrot.slane %v2174, 2
        %v2228 = vsel %vm1965, %v2225, %v2227
        %v2229 = vrot.slane %v2175, 2
        %v2230 = vrot.slane %v2176, 2
        %v2231 = vsel %vm1965, %v2229, %v2230
        %v2232 = vrot.slane %v2177, 2
        %v2233 = vsel %vm1965, %v2230, %v2232
        %v2234 = vrot.slane %v2178, 2
        %v2235 = vrot.slane %v2179, 2
        %v2236 = vsel %vm1965, %v2234, %v2235
        %v2237 = vrot.slane %v2180, 2
        %v2238 = vsel %vm1965, %v2235, %v2237
        %v2239 = vrot.slane %v2181, 2
        %v2240 = vrot.slane %v2182, 2
        %v2241 = vsel %vm1965, %v2239, %v2240
        %v2242 = vrot.slane %v2183, 2
        %v2243 = vsel %vm1965, %v2240, %v2242
        %v2244 = vrot.slane %v2184, 2
        %v2245 = vrot.slane %v2185, 2
        %v2246 = vsel %vm1965, %v2244, %v2245
        %v2247 = vrot.slane %v2186, 2
        %v2248 = vsel %vm1965, %v2245, %v2247
        %v2249 = vrot.slane %v2187, 2
        %v2250 = vrot.slane %v2188, 2
        %v2251 = vsel %vm1965, %v2249, %v2250
        %v2252 = vrot.slane %v2189, 2
        %v2253 = vsel %vm1965, %v2250, %v2252
        %v2270 = vadd.f32 %v2146, %v2216
        %v2271 = vadd.f32 %v2147, %v2218
        %v2272 = vadd.f32 %v2148, %v2221
        %v2273 = vadd.f32 %v2149, %v2223
        %v2274 = vadd.f32 %v2150, %v2226
        %v2275 = vadd.f32 %v2151, %v2228
        %v2276 = vadd.f32 %v2152, %v2231
        %v2277 = vadd.f32 %v2153, %v2233
        %v2278 = vadd.f32 %v2154, %v2236
        %v2279 = vadd.f32 %v2155, %v2238
        %v2280 = vadd.f32 %v2156, %v2241
        %v2281 = vadd.f32 %v2157, %v2243
        %v2282 = vadd.f32 %v2158, %v2246
        %v2283 = vadd.f32 %v2159, %v2248
        %v2284 = vadd.f32 %v2160, %v2251
        %v2285 = vadd.f32 %v2161, %v2253
        %v2286 = vld [vmem:[%s4] sm:$0x1]
        %v2288 = vlaneseq
        %v2289 = vshrl.u32 %v2288, 7
        %v2290 = vsub.s32 0, %v2289
        %v2291 = vrot.slane %v2286, %v2290
        %v2293 = vadd.f32 %v2270, %v2291
        %v2294 = vadd.f32 %v2271, %v2291
        %v2295 = vadd.f32 %v2272, %v2291
        %v2296 = vadd.f32 %v2273, %v2291
        %v2297 = vadd.f32 %v2274, %v2291
        %v2298 = vadd.f32 %v2275, %v2291
        %v2299 = vadd.f32 %v2276, %v2291
        %v2300 = vadd.f32 %v2277, %v2291
        %v2301 = vadd.f32 %v2278, %v2291
        %v2302 = vadd.f32 %v2279, %v2291
        %v2303 = vadd.f32 %v2280, %v2291
        %v2304 = vadd.f32 %v2281, %v2291
        %v2305 = vadd.f32 %v2282, %v2291
        %v2306 = vadd.f32 %v2283, %v2291
        %v2307 = vadd.f32 %v2284, %v2291
        %v2308 = vadd.f32 %v2285, %v2291
        %v2309 = vmax.f32 %v2293, 0.0
        %v2310 = vmax.f32 %v2294, 0.0
        %v2311 = vmax.f32 %v2295, 0.0
        %v2312 = vmax.f32 %v2296, 0.0
        %v2313 = vmax.f32 %v2297, 0.0
        %v2314 = vmax.f32 %v2298, 0.0
        %v2315 = vmax.f32 %v2299, 0.0
        %v2316 = vmax.f32 %v2300, 0.0
        %v2317 = vmax.f32 %v2301, 0.0
        %v2318 = vmax.f32 %v2302, 0.0
        %v2319 = vmax.f32 %v2303, 0.0
        %v2320 = vmax.f32 %v2304, 0.0
        %v2321 = vmax.f32 %v2305, 0.0
        %v2322 = vmax.f32 %v2306, 0.0
        %v2323 = vmax.f32 %v2307, 0.0
        %v2324 = vmax.f32 %v2308, 0.0
        %v2325 = vmin.f32 %v2309, 6.0
        %v2326 = vmin.f32 %v2310, 6.0
        %v2327 = vmin.f32 %v2311, 6.0
        %v2328 = vmin.f32 %v2312, 6.0
        %v2329 = vmin.f32 %v2313, 6.0
        %v2330 = vmin.f32 %v2314, 6.0
        %v2331 = vmin.f32 %v2315, 6.0
        %v2332 = vmin.f32 %v2316, 6.0
        %v2333 = vmin.f32 %v2317, 6.0
        %v2334 = vmin.f32 %v2318, 6.0
        %v2335 = vmin.f32 %v2319, 6.0
        %v2336 = vmin.f32 %v2320, 6.0
        %v2337 = vmin.f32 %v2321, 6.0
        %v2338 = vmin.f32 %v2322, 6.0
        %v2339 = vmin.f32 %v2323, 6.0
        %v2340 = vmin.f32 %v2324, 6.0
        %v2341 = vld [vmem:[%s5] sm:$0xf]
        %v2342 = vld [vmem:[%s6] sm:$0xf]
        %2344 = vset.pattern.permute.xlu0 0
        %2345 = vperm.xlu0 %2344, %v2342
        %v2346 = vpop.permute.xlu0 %2345
        %vm2348 = vcmask 195584
        %v2350 = vsel %vm2348, %v2341, 0
        %v2353 = vsel %vm2348, %v2325, 0
        %v2356 = vsel %vm2348, %v2326, 0
        %v2359 = vsel %vm2348, %v2327, 0
        %v2362 = vsel %vm2348, %v2328, 0
        %v2365 = vsel %vm2348, %v2329, 0
        %v2368 = vsel %vm2348, %v2330, 0
        %v2371 = vsel %vm2348, %v2331, 0
        %v2374 = vsel %vm2348, %v2332, 0
        %v2377 = vsel %vm2348, %v2333, 0
        %v2380 = vsel %vm2348, %v2334, 0
        %v2383 = vsel %vm2348, %v2335, 0
        %v2386 = vsel %vm2348, %v2336, 0
        %v2389 = vsel %vm2348, %v2337, 0
        %v2392 = vsel %vm2348, %v2338, 0
        %v2395 = vsel %vm2348, %v2339, 0
        %v2398 = vsel %vm2348, %v2340, 0
        %2400 = vmatprep.subr.mxu0 0.0
        %2401 = vmatpush1.xpose.msra.mxu0 %v2353
        %2402 = vmatprep.subr.mxu0 0.0
        %2403 = vmatpush1.xpose.msra.mxu0 %v2356
        %2404 = vmatprep.subr.mxu0 0.0
        %2405 = vmatpush1.xpose.msra.mxu0 %v2359
        %2406 = vmatprep.subr.mxu0 0.0
        %2407 = vmatpush1.xpose.msra.mxu0 %v2362
        %2408 = vmatprep.subr.mxu0 0.0
        %2409 = vmatpush1.xpose.msra.mxu0 %v2365
        %2410 = vmatprep.subr.mxu0 0.0
        %2411 = vmatpush1.xpose.msra.mxu0 %v2368
        %2412 = vmatprep.subr.mxu0 0.0
        %2413 = vmatpush1.xpose.msra.mxu0 %v2371
        %2414 = vmatprep.subr.mxu0 0.0
        %2415 = vmatpush1.xpose.msra.mxu0 %v2374
        %2416 = vmatprep.subr.mxu0 0.0
        %2417 = vmatpush1.xpose.msra.mxu0 %v2377
        %2418 = vmatprep.subr.mxu0 0.0
        %2419 = vmatpush1.xpose.msra.mxu0 %v2380
        %2420 = vmatprep.subr.mxu0 0.0
        %2421 = vmatpush1.xpose.msra.mxu0 %v2383
        %2422 = vmatprep.subr.mxu0 0.0
        %2423 = vmatpush1.xpose.msra.mxu0 %v2386
        %2424 = vmatprep.subr.mxu0 0.0
        %2425 = vmatpush1.xpose.msra.mxu0 %v2389
        %2426 = vmatprep.subr.mxu0 0.0
        %2427 = vmatpush1.xpose.msra.mxu0 %v2392
        %2428 = vmatprep.subr.mxu0 0.0
        %2429 = vmatpush1.xpose.msra.mxu0 %v2395
        %2430 = vmatprep.subr.mxu0 0.0
        %2431 = vmatpush1.xpose.msra.mxu0 %v2398
        %2432 = vmatprep.subr.mxu0 0.0
        %2433 = vmatpush1.xpose.msra.mxu0 0.0
        %2434 = vmatprep.subr.mxu0 0.0
        %2435 = vmatpush1.xpose.msra.mxu0 0.0
        %2436 = vmatprep.subr.mxu0 0.0
        %2437 = vmatpush1.xpose.msra.mxu0 0.0
        %2438 = vmatprep.subr.mxu0 0.0
        %2439 = vmatpush1.xpose.msra.mxu0 0.0
        %2440 = vmatprep.subr.mxu0 0.0
        %2441 = vmatpush1.xpose.msra.mxu0 0.0
        %2442 = vmatprep.subr.mxu0 0.0
        %2443 = vmatpush1.xpose.msra.mxu0 0.0
        %2444 = vmatprep.subr.mxu0 0.0
        %2445 = vmatpush1.xpose.msra.mxu0 0.0
        %2446 = vmatprep.subr.mxu0 0.0
        %2447 = vmatpush1.xpose.msra.mxu0 0.0
        %2448 = vmatprep.subr.mxu0 0.0
        %2449 = vmatpush1.xpose.msra.mxu0 0.0
        %2450 = vmatprep.subr.mxu0 0.0
        %2451 = vmatpush1.xpose.msra.mxu0 0.0
        %2452 = vmatprep.subr.mxu0 0.0
        %2453 = vmatpush1.xpose.msra.mxu0 0.0
        %2454 = vmatprep.subr.mxu0 0.0
        %2455 = vmatpush1.xpose.msra.mxu0 0.0
        %2456 = vmatprep.subr.mxu0 0.0
        %2457 = vmatpush1.xpose.msra.mxu0 0.0
        %2458 = vmatprep.subr.mxu0 0.0
        %2459 = vmatpush1.xpose.msra.mxu0 0.0
        %2460 = vmatprep.subr.mxu0 0.0
        %2461 = vmatpush1.xpose.msra.mxu0 0.0
        %2462 = vmatprep.subr.mxu0 0.0
        %2463 = vmatpush1.xpose.msra.mxu0 0.0
        %2464 = vmatprep.mubr.f32.mxu0 0.0
        %2465 = vmatmul.mubr.f32.gmra.mrb[0].mxu0 %v2350
        %v2466 = vpop.f32.mrb[0].mxu0
        %v2467 = vadd.f32 %v2346, %v2466
        %v2468 = vpop.f32.mrb[0].mxu0
        %2469 = vdwg.mxu0
        %v2470 = vld [vmem:[%s362] sm:$0xf]
        %v2471 = vadd.f32 %v2467, %v2470
        %2472 = vst [vmem:[%s345] sm:$0xf] %v2471
        %s2473 = sand.u32 %s228, 1
        %s2474 = scalar_lea.sflag [#allocation3], %s2473
        %s2475 = sand.u32 %s228, 1
        %s2476 = smul.addr %s2475, 4
        %s2477 = scalar_lea.vmem [#allocation2], %s2476
        // Predicated region
        $region53: #{tpu_custom_call.1} parent=51 // pred_check
          %p2478 = pneg %p238
        $region54: #{tpu_custom_call.1} parent=51 // pred_check_branch
          %2480 = sbr.rel (%p2478) target = $region56
        $region55: #{tpu_custom_call.1} parent=51 // pred_region
          %s2482 = ssub.s32 64, 64
          %2483 = vsyncadd %s2474, %s2482
          %s2484 = smul.addr %s26, 2
          %s2485 = sadd.s32 %s27, %s2484
          %s2486 = smul.addr %s2485, 64
          %s2487 = scalar_lea.hbm %s8, %s2486
          %s2489 = sshll.u32 %s2477, 4
          %s2490 = int_to_ptr.vmem [resolvable:$true] %s2489
          %2492 = dma.vmem_to_hbm [thread:$0]  %s2490, 64, %s2487, %s2474
        $region56: #{tpu_custom_call.1} parent=51 // pred_fallthru
          _
      $region52: #{tpu_custom_call.1} parent=5 // pred_fallthru
        _
      %p2493 = scmp.le.s32.totalorder 2, %s17
      // Predicated region
      $region57: #{tpu_custom_call.1} parent=5 // pred_check
        %p2494 = pneg %p2493
      $region58: #{tpu_custom_call.1} parent=5 // pred_check_branch
        %2496 = sbr.rel (%p2494) target = $region60
      $region59: #{tpu_custom_call.1} parent=5 // pred_region
        %s2497 = ssub.s32 %s17, 2
        // Predicated region
        $region61: #{tpu_custom_call.1} parent=59 // pred_check
          %p2498 = pneg %p244
        $region62: #{tpu_custom_call.1} parent=59 // pred_check_branch
          %2500 = sbr.rel (%p2498) target = $region64
        $region63: #{tpu_custom_call.1} parent=59 // pred_region
          %s2501 = sand.u32 %s229, 1
          %s2502 = scalar_lea.sflag [#allocation3], %s2501
          %s2503 = sand.u32 %s229, 1
          %s2504 = smul.addr %s2503, 4
          %s2505 = scalar_lea.vmem [#allocation2], %s2504
          %2506 = dma.done %s2502, 64
        $region64: #{tpu_custom_call.1} parent=59 // pred_fallthru
          _
      $region60: #{tpu_custom_call.1} parent=5 // pred_fallthru
        _
    $region6: #{tpu_custom_call.1} parent=1 // loop_footer
      %s21 = sadd.s32 1, %s17
    $region7: #{tpu_custom_call.1} parent=1 // loop_footer_branch
      %16 = sbr.rel target = $region3
    $region8: #{tpu_custom_call.1} parent=1 // loop_exit
      _
    %2507 = vsyncpa [#allocation3], 1
    %s2508 = scalar_lea.sflag [#allocation3], 1
    %2509 = vsyncpa %s2508, 1

</llo_original>
